<compile_context>
chip_gen: v7x
topology: tpu7x:2x2x1
jax: 0.10.0
libtpu: 0.0.40
codegen_flags: <defaults>
</compile_context>

<pallas_src>
import math
from functools import partial

import jax
import jax.numpy as jnp
import numpy as np
from jax.experimental import pallas as pl
from jax.experimental.pallas import tpu as pltpu


# ---------------------------------------------------------------------------
# Fused kernel: one block of Bt batch elements per grid step.
# ---------------------------------------------------------------------------
def _elo_attn_kernel(x_ref, eloq_ref, g_ref, b_ref, wqkv_ref, wout_ref,
                     bout_ref, out_ref, *, heads, dim_head, scale, eps):
    # x_ref:    (Bt, N, dim)      block of batch elements
    # eloq_ref: (Bt, 1, inner)    precomputed elo_emb @ W_elo for this block
    # g_ref/b_ref: (1, dim)       LayerNorm gamma / beta (f32)
    # wqkv_ref: (dim, 3*inner)    qkv projection weight (bf16)
    # wout_ref: (inner, dim)      output projection weight (bf16)
    # bout_ref: (1, dim)          output projection bias (f32)
    # out_ref:  (Bt, N, dim)
    Bt, N, dim = x_ref.shape
    inner = heads * dim_head

    x = x_ref[...].reshape(Bt * N, dim)                       # flatten batch

    # ---- LayerNorm (single-pass statistics) -------------------------------
    inv_d = 1.0 / dim
    s1 = jnp.sum(x, axis=-1, keepdims=True)
    s2 = jnp.sum(x * x, axis=-1, keepdims=True)
    mu = s1 * inv_d
    var = s2 * inv_d - mu * mu
    xn = (x - mu) * jax.lax.rsqrt(var + eps)
    xn = xn * g_ref[...] + b_ref[...]                         # (Bt*N, dim)

    # ---- qkv projection: one lane-dense MXU matmul, M = Bt*N --------------
    qkv = jnp.dot(xn.astype(jnp.bfloat16), wqkv_ref[...],
                  preferred_element_type=jnp.float32)         # (Bt*N, 3*inner)

    q = qkv[:, 0 * inner:1 * inner].reshape(Bt, N, inner)
    k = qkv[:, 1 * inner:2 * inner].reshape(Bt, N, inner)
    v = qkv[:, 2 * inner:3 * inner].reshape(Bt, N, inner)

    # ---- elo bias on the queries (precomputed in the wrapper) -------------
    q = q + eloq_ref[...]                                     # (Bt,1,inner) bcast

    qb = q.astype(jnp.bfloat16)
    kb = k.astype(jnp.bfloat16)
    vb = v.astype(jnp.bfloat16)

    # ---- per-head attention, batched over Bt with 3-D einsums -------------
    head_outs = []
    for h in range(heads):
        lo = h * dim_head
        hi = lo + dim_head
        qh = qb[:, :, lo:hi]                                  # (Bt, N, dh)
        kh = kb[:, :, lo:hi]
        vh = vb[:, :, lo:hi]

        dots = jnp.einsum('bnd,bmd->bnm', qh, kh,
                          preferred_element_type=jnp.float32) * scale
        dots = dots - jnp.max(dots, axis=-1, keepdims=True)
        e = jnp.exp(dots)
        denom = jnp.sum(e, axis=-1, keepdims=True)
        attn = e * pl.reciprocal(denom, approx=True)          # EUP, not VALU
        # dropout(p=0.0) == identity

        head_outs.append(
            jnp.einsum('bnm,bmd->bnd', attn.astype(jnp.bfloat16), vh,
                       preferred_element_type=jnp.float32))   # (Bt, N, dh)

    # inner <= 128 lanes -> concat stays within one vreg row; single out-proj.
    y = jnp.concatenate(head_outs, axis=-1).reshape(Bt * N, inner)
    out = jnp.dot(y.astype(jnp.bfloat16), wout_ref[...],
                  preferred_element_type=jnp.float32)         # (Bt*N, dim)
    out = out + bout_ref[...]
    out_ref[...] = out.reshape(Bt, N, dim)


# ---------------------------------------------------------------------------
# Wrapper
# ---------------------------------------------------------------------------
def _choose_block_batch(B, N, rows_target=256):
    """Largest divisor of B with Bt*N <= rows_target, keeping grid >= 2."""
    best = 1
    for bt in range(1, B + 1):
        if B % bt == 0 and bt * N <= max(rows_target, N):
            best = bt
    if B >= 2 and B // best < 2:           # keep >= 2 grid steps (v7x megacore)
        for bt in range(best, 0, -1):
            if B % bt == 0 and B // bt >= 2:
                best = bt
                break
    return best


def _vmem_limit_bytes(Bt, N, dim, inner):
    f32, bf16, db = 4, 2, 2
    io = db * (2 * Bt * N * dim * f32 + Bt * inner * f32)
    weights = db * (dim * 3 * inner * bf16 + inner * dim * bf16 + 3 * dim * f32)
    scratch = 8 * Bt * N * (3 * inner + N + inner) * f32      # temporaries
    total = io + weights + scratch + (8 << 20)
    return int(min(max(total, 16 << 20), 32 << 20))


def elo_aware_attention(x, elo_emb, params, *, heads, dim_head, eps=1e-5,
                        block_batch=None):
    """x: (B, N, dim) f32.  elo_emb: (B, elo_dim) f32."""
    B, N, dim = x.shape
    inner = heads * dim_head
    scale = dim_head ** (-0.5)

    # Hoisted elo query projection (tiny) -> (B, 1, inner), f32.
    elo_q = (elo_emb @ params["w_elo"]).reshape(B, 1, inner).astype(jnp.float32)

    # Weights cast to bf16 once, host side (f32 accumulation in-kernel).
    w_qkv = params["w_qkv"].astype(jnp.bfloat16)
    w_out = params["w_out"].astype(jnp.bfloat16)

    Bt = block_batch or _choose_block_batch(B, N)
    assert B % Bt == 0
    grid = (B // Bt,)

    kernel = partial(_elo_attn_kernel, heads=heads, dim_head=dim_head,
                     scale=scale, eps=eps)
    const2 = lambda b: (0, 0)

    return pl.pallas_call(
        kernel,
        out_shape=jax.ShapeDtypeStruct((B, N, dim), jnp.float32),
        grid=grid,
        in_specs=[
            pl.BlockSpec((Bt, N, dim), lambda b: (b, 0, 0)),      # x
            pl.BlockSpec((Bt, 1, inner), lambda b: (b, 0, 0)),    # elo_q
            pl.BlockSpec((1, dim), const2),                       # ln gamma
            pl.BlockSpec((1, dim), const2),                       # ln beta
            pl.BlockSpec((dim, 3 * inner), const2),               # w_qkv (bf16)
            pl.BlockSpec((inner, dim), const2),                   # w_out (bf16)
            pl.BlockSpec((1, dim), const2),                       # b_out
        ],
        out_specs=pl.BlockSpec((Bt, N, dim), lambda b: (b, 0, 0)),
        compiler_params=pltpu.CompilerParams(
            dimension_semantics=("parallel",),
            vmem_limit_bytes=_vmem_limit_bytes(Bt, N, dim, inner)),
    )(x, elo_q, params["ln_gamma"], params["ln_beta"], w_qkv, w_out,
      params["b_out"])


# ---------------------------------------------------------------------------
# Parameter init (synthetic, deterministic) and a pure-JAX reference
# ---------------------------------------------------------------------------
def init_params(key, dim, heads, dim_head, elo_dim):
    inner = heads * dim_head
    k = jax.random.split(key, 6)
    return {
        "ln_gamma": 1.0 + 0.1 * jax.random.normal(k[0], (1, dim), jnp.float32),
        "ln_beta": 0.1 * jax.random.normal(k[1], (1, dim), jnp.float32),
        "w_qkv": jax.random.normal(k[2], (dim, 3 * inner), jnp.float32)
                 * (1.0 / math.sqrt(dim)),
        "w_elo": jax.random.normal(k[3], (elo_dim, inner), jnp.float32)
                 * (1.0 / math.sqrt(elo_dim)),
        "w_out": jax.random.normal(k[4], (inner, dim), jnp.float32)
                 * (1.0 / math.sqrt(inner)),
        "b_out": 0.1 * jax.random.normal(k[5], (1, dim), jnp.float32),
    }


def reference(x, elo_emb, params, heads, dim_head, eps=1e-5):
    B, N, dim = x.shape
    inner = heads * dim_head
    mu = x.mean(-1, keepdims=True)
    var = ((x - mu) ** 2).mean(-1, keepdims=True)
    xn = (x - mu) / jnp.sqrt(var + eps)
    xn = xn * params["ln_gamma"].reshape(1, 1, dim) + params["ln_beta"].reshape(1, 1, dim)

    qkv = xn @ params["w_qkv"]
    q, k, v = jnp.split(qkv, 3, axis=-1)

    def to_heads(t):  # 'b n (h d) -> b h n d'
        return t.reshape(B, N, heads, dim_head).transpose(0, 2, 1, 3)

    q, k, v = map(to_heads, (q, k, v))
    elo_eff = (elo_emb @ params["w_elo"]).reshape(B, heads, 1, dim_head)
    q = q + elo_eff

    dots = jnp.einsum("bhnd,bhmd->bhnm", q, k) * (dim_head ** -0.5)
    attn = jax.nn.softmax(dots, axis=-1)
    out = jnp.einsum("bhnm,bhmd->bhnd", attn, v)
    out = out.transpose(0, 2, 1, 3).reshape(B, N, inner)
    return out @ params["w_out"] + params["b_out"].reshape(1, 1, dim)


# ---------------------------------------------------------------------------
if __name__ == "__main__":
    # Small config consistent with the module: dim=32, heads=4, dim_head=16
    # (inner_dim=64), elo_dim=16, batch=8, seq len=8 -> Bt=4, grid=(2,).
    B, N, DIM = 8, 8, 32
    HEADS, DIM_HEAD, ELO_DIM = 4, 16, 16

    key = jax.random.PRNGKey(0)
    kx, ke, kp = jax.random.split(key, 3)
    x = jax.random.normal(kx, (B, N, DIM), jnp.float32)
    elo_emb = jax.random.normal(ke, (B, ELO_DIM), jnp.float32)
    params = init_params(kp, DIM, HEADS, DIM_HEAD, ELO_DIM)

    out = elo_aware_attention(x, elo_emb, params, heads=HEADS, dim_head=DIM_HEAD)
    out = jax.block_until_ready(out)
    assert out.shape == (B, N, DIM), out.shape

    ref = jax.block_until_ready(reference(x, elo_emb, params, HEADS, DIM_HEAD))
    # bf16 matmul operands (f32 accumulation) -> slightly looser tolerance.
    np.testing.assert_allclose(np.asarray(out), np.asarray(ref),
                               rtol=2e-2, atol=2e-2)

    print("KERNEL_OK")
</pallas_src>

<mosaic_0001>
module attributes {stable_mosaic.version = 11 : i64} {
  func.func @_elo_attn_kernel(%arg0: i32, %arg1: memref<4x8x32xf32, #tpu.memory_space<vmem>>, %arg2: memref<4x1x64xf32, #tpu.memory_space<vmem>>, %arg3: memref<1x32xf32, #tpu.memory_space<vmem>>, %arg4: memref<1x32xf32, #tpu.memory_space<vmem>>, %arg5: memref<32x192xbf16, #tpu.memory_space<vmem>>, %arg6: memref<64x32xbf16, #tpu.memory_space<vmem>>, %arg7: memref<1x32xf32, #tpu.memory_space<vmem>>, %arg8: memref<4x8x32xf32, #tpu.memory_space<vmem>>) attributes {dimension_semantics = [#tpu.dimension_semantics<parallel>], iteration_bounds = array<i64: 2>, scalar_prefetch = 0 : i64, scratch_operands = 0 : i64, tpu.core_type = #tpu.core_type<tc>, window_params = [{transform_indices = @transform_0, window_bounds = array<i64: 4, 8, 32>}, {transform_indices = @transform_1, window_bounds = array<i64: 4, 1, 64>}, {pipeline_mode = #tpu.pipeline_mode<synchronous>, transform_indices = @transform_2, window_bounds = array<i64: 1, 32>}, {pipeline_mode = #tpu.pipeline_mode<synchronous>, transform_indices = @transform_3, window_bounds = array<i64: 1, 32>}, {pipeline_mode = #tpu.pipeline_mode<synchronous>, transform_indices = @transform_4, window_bounds = array<i64: 32, 192>}, {pipeline_mode = #tpu.pipeline_mode<synchronous>, transform_indices = @transform_5, window_bounds = array<i64: 64, 32>}, {pipeline_mode = #tpu.pipeline_mode<synchronous>, transform_indices = @transform_6, window_bounds = array<i64: 1, 32>}, {transform_indices = @transform_7, window_bounds = array<i64: 4, 8, 32>}]} {
    %c0 = arith.constant 0 : index
    %c0_0 = arith.constant 0 : index
    %c0_1 = arith.constant 0 : index
    %0 = vector.load %arg1[%c0, %c0_0, %c0_1] : memref<4x8x32xf32, #tpu.memory_space<vmem>>, vector<4x8x32xf32>
    %1 = vector.shape_cast %0 : vector<4x8x32xf32> to vector<32x32xf32>
    %cst = arith.constant dense<0.000000e+00> : vector<32xf32>
    %2 = vector.multi_reduction <add>, %1, %cst [1] : vector<32x32xf32> to vector<32xf32>
    %3 = vector.shape_cast %2 : vector<32xf32> to vector<32x1xf32>
    %4 = arith.mulf %1, %1 : vector<32x32xf32>
    %cst_2 = arith.constant dense<0.000000e+00> : vector<32xf32>
    %5 = vector.multi_reduction <add>, %4, %cst_2 [1] : vector<32x32xf32> to vector<32xf32>
    %6 = vector.shape_cast %5 : vector<32xf32> to vector<32x1xf32>
    %cst_3 = arith.constant 3.125000e-02 : f32
    %7 = vector.broadcast %cst_3 : f32 to vector<32x1xf32>
    %8 = arith.mulf %3, %7 : vector<32x1xf32>
    %cst_4 = arith.constant 3.125000e-02 : f32
    %9 = vector.broadcast %cst_4 : f32 to vector<32x1xf32>
    %10 = arith.mulf %6, %9 : vector<32x1xf32>
    %11 = arith.mulf %8, %8 : vector<32x1xf32>
    %12 = arith.subf %10, %11 : vector<32x1xf32>
    %13 = vector.broadcast %8 : vector<32x1xf32> to vector<32x32xf32>
    %14 = arith.subf %1, %13 : vector<32x32xf32>
    %cst_5 = arith.constant 9.99999974E-6 : f32
    %15 = vector.broadcast %cst_5 : f32 to vector<32x1xf32>
    %16 = arith.addf %12, %15 : vector<32x1xf32>
    %17 = math.rsqrt %16 : vector<32x1xf32>
    %18 = vector.broadcast %17 : vector<32x1xf32> to vector<32x32xf32>
    %19 = arith.mulf %14, %18 : vector<32x32xf32>
    %c0_6 = arith.constant 0 : index
    %c0_7 = arith.constant 0 : index
    %20 = vector.load %arg3[%c0_6, %c0_7] : memref<1x32xf32, #tpu.memory_space<vmem>>, vector<1x32xf32>
    %21 = vector.broadcast %20 : vector<1x32xf32> to vector<32x32xf32>
    %22 = arith.mulf %19, %21 : vector<32x32xf32>
    %c0_8 = arith.constant 0 : index
    %c0_9 = arith.constant 0 : index
    %23 = vector.load %arg4[%c0_8, %c0_9] : memref<1x32xf32, #tpu.memory_space<vmem>>, vector<1x32xf32>
    %24 = vector.broadcast %23 : vector<1x32xf32> to vector<32x32xf32>
    %25 = arith.addf %22, %24 : vector<32x32xf32>
    %26 = arith.truncf %25 : vector<32x32xf32> to vector<32x32xbf16>
    %c0_10 = arith.constant 0 : index
    %c0_11 = arith.constant 0 : index
    %27 = vector.load %arg5[%c0_10, %c0_11] : memref<32x192xbf16, #tpu.memory_space<vmem>>, vector<32x192xbf16>
    %cst_12 = arith.constant dense<0.000000e+00> : vector<32x192xf32>
    %28 = tpu.matmul %26, %27, %cst_12 {dimension_numbers = #tpu.dot_dimension_numbers<[1], [0], [0], [1], [0, 0, 1, 1], [], []>} : vector<32x32xbf16>, vector<32x192xbf16>, vector<32x192xf32> -> vector<32x192xf32>
    %29 = vector.extract_strided_slice %28 {offsets = [0, 0], sizes = [32, 64], strides = [1, 1]} : vector<32x192xf32> to vector<32x64xf32>
    %30 = vector.shape_cast %29 : vector<32x64xf32> to vector<4x8x64xf32>
    %31 = vector.extract_strided_slice %28 {offsets = [0, 64], sizes = [32, 64], strides = [1, 1]} : vector<32x192xf32> to vector<32x64xf32>
    %32 = vector.shape_cast %31 : vector<32x64xf32> to vector<4x8x64xf32>
    %33 = vector.extract_strided_slice %28 {offsets = [0, 128], sizes = [32, 64], strides = [1, 1]} : vector<32x192xf32> to vector<32x64xf32>
    %34 = vector.shape_cast %33 : vector<32x64xf32> to vector<4x8x64xf32>
    %c0_13 = arith.constant 0 : index
    %c0_14 = arith.constant 0 : index
    %c0_15 = arith.constant 0 : index
    %35 = vector.load %arg2[%c0_13, %c0_14, %c0_15] : memref<4x1x64xf32, #tpu.memory_space<vmem>>, vector<4x1x64xf32>
    %36 = vector.broadcast %35 : vector<4x1x64xf32> to vector<4x8x64xf32>
    %37 = arith.addf %30, %36 : vector<4x8x64xf32>
    %38 = arith.truncf %37 : vector<4x8x64xf32> to vector<4x8x64xbf16>
    %39 = arith.truncf %32 : vector<4x8x64xf32> to vector<4x8x64xbf16>
    %40 = arith.truncf %34 : vector<4x8x64xf32> to vector<4x8x64xbf16>
    %41 = vector.extract_strided_slice %38 {offsets = [0, 0, 0], sizes = [4, 8, 16], strides = [1, 1, 1]} : vector<4x8x64xbf16> to vector<4x8x16xbf16>
    %42 = vector.extract_strided_slice %39 {offsets = [0, 0, 0], sizes = [4, 8, 16], strides = [1, 1, 1]} : vector<4x8x64xbf16> to vector<4x8x16xbf16>
    %43 = vector.extract_strided_slice %40 {offsets = [0, 0, 0], sizes = [4, 8, 16], strides = [1, 1, 1]} : vector<4x8x64xbf16> to vector<4x8x16xbf16>
    "tpu.trace_start"() <{level = 10 : i32, message = "bnd,bmd->bnm"}> : () -> ()
    %cst_16 = arith.constant dense<0.000000e+00> : vector<4x8x8xf32>
    %44 = tpu.matmul %41, %42, %cst_16 {dimension_numbers = #tpu.dot_dimension_numbers<[2], [2], [1], [1], [0, 0, 0, 1, 1, 1], [0], [0]>} : vector<4x8x16xbf16>, vector<4x8x16xbf16>, vector<4x8x8xf32> -> vector<4x8x8xf32>
    "tpu.trace_stop"() : () -> ()
    %cst_17 = arith.constant 2.500000e-01 : f32
    %45 = vector.broadcast %cst_17 : f32 to vector<4x8x8xf32>
    %46 = arith.mulf %44, %45 : vector<4x8x8xf32>
    %cst_18 = arith.constant dense<0xFF800000> : vector<4x8xf32>
    %47 = vector.multi_reduction <maximumf>, %46, %cst_18 [2] : vector<4x8x8xf32> to vector<4x8xf32>
    %48 = vector.shape_cast %47 : vector<4x8xf32> to vector<4x8x1xf32>
    %49 = vector.broadcast %48 : vector<4x8x1xf32> to vector<4x8x8xf32>
    %50 = arith.subf %46, %49 : vector<4x8x8xf32>
    %51 = math.exp %50 : vector<4x8x8xf32>
    %cst_19 = arith.constant dense<0.000000e+00> : vector<4x8xf32>
    %52 = vector.multi_reduction <add>, %51, %cst_19 [2] : vector<4x8x8xf32> to vector<4x8xf32>
    %53 = vector.shape_cast %52 : vector<4x8xf32> to vector<4x8x1xf32>
    %54 = tpu.reciprocal %53 {approx = true} : vector<4x8x1xf32> -> vector<4x8x1xf32>
    %55 = vector.broadcast %54 : vector<4x8x1xf32> to vector<4x8x8xf32>
    %56 = arith.mulf %51, %55 : vector<4x8x8xf32>
    %57 = arith.truncf %56 : vector<4x8x8xf32> to vector<4x8x8xbf16>
    "tpu.trace_start"() <{level = 10 : i32, message = "bnm,bmd->bnd"}> : () -> ()
    %cst_20 = arith.constant dense<0.000000e+00> : vector<4x8x16xf32>
    %58 = tpu.matmul %57, %43, %cst_20 {dimension_numbers = #tpu.dot_dimension_numbers<[2], [1], [1], [2], [0, 0, 0, 1, 1, 2], [0], [0]>} : vector<4x8x8xbf16>, vector<4x8x16xbf16>, vector<4x8x16xf32> -> vector<4x8x16xf32>
    "tpu.trace_stop"() : () -> ()
    %59 = vector.extract_strided_slice %38 {offsets = [0, 0, 16], sizes = [4, 8, 16], strides = [1, 1, 1]} : vector<4x8x64xbf16> to vector<4x8x16xbf16>
    %60 = vector.extract_strided_slice %39 {offsets = [0, 0, 16], sizes = [4, 8, 16], strides = [1, 1, 1]} : vector<4x8x64xbf16> to vector<4x8x16xbf16>
    %61 = vector.extract_strided_slice %40 {offsets = [0, 0, 16], sizes = [4, 8, 16], strides = [1, 1, 1]} : vector<4x8x64xbf16> to vector<4x8x16xbf16>
    "tpu.trace_start"() <{level = 10 : i32, message = "bnd,bmd->bnm"}> : () -> ()
    %cst_21 = arith.constant dense<0.000000e+00> : vector<4x8x8xf32>
    %62 = tpu.matmul %59, %60, %cst_21 {dimension_numbers = #tpu.dot_dimension_numbers<[2], [2], [1], [1], [0, 0, 0, 1, 1, 1], [0], [0]>} : vector<4x8x16xbf16>, vector<4x8x16xbf16>, vector<4x8x8xf32> -> vector<4x8x8xf32>
    "tpu.trace_stop"() : () -> ()
    %cst_22 = arith.constant 2.500000e-01 : f32
    %63 = vector.broadcast %cst_22 : f32 to vector<4x8x8xf32>
    %64 = arith.mulf %62, %63 : vector<4x8x8xf32>
    %cst_23 = arith.constant dense<0xFF800000> : vector<4x8xf32>
    %65 = vector.multi_reduction <maximumf>, %64, %cst_23 [2] : vector<4x8x8xf32> to vector<4x8xf32>
    %66 = vector.shape_cast %65 : vector<4x8xf32> to vector<4x8x1xf32>
    %67 = vector.broadcast %66 : vector<4x8x1xf32> to vector<4x8x8xf32>
    %68 = arith.subf %64, %67 : vector<4x8x8xf32>
    %69 = math.exp %68 : vector<4x8x8xf32>
    %cst_24 = arith.constant dense<0.000000e+00> : vector<4x8xf32>
    %70 = vector.multi_reduction <add>, %69, %cst_24 [2] : vector<4x8x8xf32> to vector<4x8xf32>
    %71 = vector.shape_cast %70 : vector<4x8xf32> to vector<4x8x1xf32>
    %72 = tpu.reciprocal %71 {approx = true} : vector<4x8x1xf32> -> vector<4x8x1xf32>
    %73 = vector.broadcast %72 : vector<4x8x1xf32> to vector<4x8x8xf32>
    %74 = arith.mulf %69, %73 : vector<4x8x8xf32>
    %75 = arith.truncf %74 : vector<4x8x8xf32> to vector<4x8x8xbf16>
    "tpu.trace_start"() <{level = 10 : i32, message = "bnm,bmd->bnd"}> : () -> ()
    %cst_25 = arith.constant dense<0.000000e+00> : vector<4x8x16xf32>
    %76 = tpu.matmul %75, %61, %cst_25 {dimension_numbers = #tpu.dot_dimension_numbers<[2], [1], [1], [2], [0, 0, 0, 1, 1, 2], [0], [0]>} : vector<4x8x8xbf16>, vector<4x8x16xbf16>, vector<4x8x16xf32> -> vector<4x8x16xf32>
    "tpu.trace_stop"() : () -> ()
    %77 = vector.extract_strided_slice %38 {offsets = [0, 0, 32], sizes = [4, 8, 16], strides = [1, 1, 1]} : vector<4x8x64xbf16> to vector<4x8x16xbf16>
    %78 = vector.extract_strided_slice %39 {offsets = [0, 0, 32], sizes = [4, 8, 16], strides = [1, 1, 1]} : vector<4x8x64xbf16> to vector<4x8x16xbf16>
    %79 = vector.extract_strided_slice %40 {offsets = [0, 0, 32], sizes = [4, 8, 16], strides = [1, 1, 1]} : vector<4x8x64xbf16> to vector<4x8x16xbf16>
    "tpu.trace_start"() <{level = 10 : i32, message = "bnd,bmd->bnm"}> : () -> ()
    %cst_26 = arith.constant dense<0.000000e+00> : vector<4x8x8xf32>
    %80 = tpu.matmul %77, %78, %cst_26 {dimension_numbers = #tpu.dot_dimension_numbers<[2], [2], [1], [1], [0, 0, 0, 1, 1, 1], [0], [0]>} : vector<4x8x16xbf16>, vector<4x8x16xbf16>, vector<4x8x8xf32> -> vector<4x8x8xf32>
    "tpu.trace_stop"() : () -> ()
    %cst_27 = arith.constant 2.500000e-01 : f32
    %81 = vector.broadcast %cst_27 : f32 to vector<4x8x8xf32>
    %82 = arith.mulf %80, %81 : vector<4x8x8xf32>
    %cst_28 = arith.constant dense<0xFF800000> : vector<4x8xf32>
    %83 = vector.multi_reduction <maximumf>, %82, %cst_28 [2] : vector<4x8x8xf32> to vector<4x8xf32>
    %84 = vector.shape_cast %83 : vector<4x8xf32> to vector<4x8x1xf32>
    %85 = vector.broadcast %84 : vector<4x8x1xf32> to vector<4x8x8xf32>
    %86 = arith.subf %82, %85 : vector<4x8x8xf32>
    %87 = math.exp %86 : vector<4x8x8xf32>
    %cst_29 = arith.constant dense<0.000000e+00> : vector<4x8xf32>
    %88 = vector.multi_reduction <add>, %87, %cst_29 [2] : vector<4x8x8xf32> to vector<4x8xf32>
    %89 = vector.shape_cast %88 : vector<4x8xf32> to vector<4x8x1xf32>
    %90 = tpu.reciprocal %89 {approx = true} : vector<4x8x1xf32> -> vector<4x8x1xf32>
    %91 = vector.broadcast %90 : vector<4x8x1xf32> to vector<4x8x8xf32>
    %92 = arith.mulf %87, %91 : vector<4x8x8xf32>
    %93 = arith.truncf %92 : vector<4x8x8xf32> to vector<4x8x8xbf16>
    "tpu.trace_start"() <{level = 10 : i32, message = "bnm,bmd->bnd"}> : () -> ()
    %cst_30 = arith.constant dense<0.000000e+00> : vector<4x8x16xf32>
    %94 = tpu.matmul %93, %79, %cst_30 {dimension_numbers = #tpu.dot_dimension_numbers<[2], [1], [1], [2], [0, 0, 0, 1, 1, 2], [0], [0]>} : vector<4x8x8xbf16>, vector<4x8x16xbf16>, vector<4x8x16xf32> -> vector<4x8x16xf32>
    "tpu.trace_stop"() : () -> ()
    %95 = vector.extract_strided_slice %38 {offsets = [0, 0, 48], sizes = [4, 8, 16], strides = [1, 1, 1]} : vector<4x8x64xbf16> to vector<4x8x16xbf16>
    %96 = vector.extract_strided_slice %39 {offsets = [0, 0, 48], sizes = [4, 8, 16], strides = [1, 1, 1]} : vector<4x8x64xbf16> to vector<4x8x16xbf16>
    %97 = vector.extract_strided_slice %40 {offsets = [0, 0, 48], sizes = [4, 8, 16], strides = [1, 1, 1]} : vector<4x8x64xbf16> to vector<4x8x16xbf16>
    "tpu.trace_start"() <{level = 10 : i32, message = "bnd,bmd->bnm"}> : () -> ()
    %cst_31 = arith.constant dense<0.000000e+00> : vector<4x8x8xf32>
    %98 = tpu.matmul %95, %96, %cst_31 {dimension_numbers = #tpu.dot_dimension_numbers<[2], [2], [1], [1], [0, 0, 0, 1, 1, 1], [0], [0]>} : vector<4x8x16xbf16>, vector<4x8x16xbf16>, vector<4x8x8xf32> -> vector<4x8x8xf32>
    "tpu.trace_stop"() : () -> ()
    %cst_32 = arith.constant 2.500000e-01 : f32
    %99 = vector.broadcast %cst_32 : f32 to vector<4x8x8xf32>
    %100 = arith.mulf %98, %99 : vector<4x8x8xf32>
    %cst_33 = arith.constant dense<0xFF800000> : vector<4x8xf32>
    %101 = vector.multi_reduction <maximumf>, %100, %cst_33 [2] : vector<4x8x8xf32> to vector<4x8xf32>
    %102 = vector.shape_cast %101 : vector<4x8xf32> to vector<4x8x1xf32>
    %103 = vector.broadcast %102 : vector<4x8x1xf32> to vector<4x8x8xf32>
    %104 = arith.subf %100, %103 : vector<4x8x8xf32>
    %105 = math.exp %104 : vector<4x8x8xf32>
    %cst_34 = arith.constant dense<0.000000e+00> : vector<4x8xf32>
    %106 = vector.multi_reduction <add>, %105, %cst_34 [2] : vector<4x8x8xf32> to vector<4x8xf32>
    %107 = vector.shape_cast %106 : vector<4x8xf32> to vector<4x8x1xf32>
    %108 = tpu.reciprocal %107 {approx = true} : vector<4x8x1xf32> -> vector<4x8x1xf32>
    %109 = vector.broadcast %108 : vector<4x8x1xf32> to vector<4x8x8xf32>
    %110 = arith.mulf %105, %109 : vector<4x8x8xf32>
    %111 = arith.truncf %110 : vector<4x8x8xf32> to vector<4x8x8xbf16>
    "tpu.trace_start"() <{level = 10 : i32, message = "bnm,bmd->bnd"}> : () -> ()
    %cst_35 = arith.constant dense<0.000000e+00> : vector<4x8x16xf32>
    %112 = tpu.matmul %111, %97, %cst_35 {dimension_numbers = #tpu.dot_dimension_numbers<[2], [1], [1], [2], [0, 0, 0, 1, 1, 2], [0], [0]>} : vector<4x8x8xbf16>, vector<4x8x16xbf16>, vector<4x8x16xf32> -> vector<4x8x16xf32>
    "tpu.trace_stop"() : () -> ()
    %113 = tpu.concatenate %58, %76, %94, %112 in 2 : vector<4x8x16xf32>, vector<4x8x16xf32>, vector<4x8x16xf32>, vector<4x8x16xf32> -> vector<4x8x64xf32>
    %114 = vector.shape_cast %113 : vector<4x8x64xf32> to vector<32x64xf32>
    %115 = arith.truncf %114 : vector<32x64xf32> to vector<32x64xbf16>
    %c0_36 = arith.constant 0 : index
    %c0_37 = arith.constant 0 : index
    %116 = vector.load %arg6[%c0_36, %c0_37] : memref<64x32xbf16, #tpu.memory_space<vmem>>, vector<64x32xbf16>
    %cst_38 = arith.constant dense<0.000000e+00> : vector<32x32xf32>
    %117 = tpu.matmul %115, %116, %cst_38 {dimension_numbers = #tpu.dot_dimension_numbers<[1], [0], [0], [1], [0, 0, 1, 1], [], []>} : vector<32x64xbf16>, vector<64x32xbf16>, vector<32x32xf32> -> vector<32x32xf32>
    %c0_39 = arith.constant 0 : index
    %c0_40 = arith.constant 0 : index
    %118 = vector.load %arg7[%c0_39, %c0_40] : memref<1x32xf32, #tpu.memory_space<vmem>>, vector<1x32xf32>
    %119 = vector.broadcast %118 : vector<1x32xf32> to vector<32x32xf32>
    %120 = arith.addf %117, %119 : vector<32x32xf32>
    %121 = vector.shape_cast %120 : vector<32x32xf32> to vector<4x8x32xf32>
    %c0_41 = arith.constant 0 : index
    %c0_42 = arith.constant 0 : index
    %c0_43 = arith.constant 0 : index
    %122 = vector.load %arg8[%c0_41, %c0_42, %c0_43] : memref<4x8x32xf32, #tpu.memory_space<vmem>>, vector<4x8x32xf32>
    tpu.vector_store %arg8[%c0_41, %c0_42, %c0_43], %121 {strides = array<i32>} : memref<4x8x32xf32, #tpu.memory_space<vmem>>, vector<4x8x32xf32>,
    return
  }
  func.func @transform_0(%arg0: i32) -> (i32, i32, i32) {
    %c0_i32 = arith.constant 0 : i32
    %c0_i32_0 = arith.constant 0 : i32
    %c0_i32_1 = arith.constant 0 : i32
    return %arg0, %c0_i32, %c0_i32_0 : i32, i32, i32
  }
  func.func @transform_1(%arg0: i32) -> (i32, i32, i32) {
    %c0_i32 = arith.constant 0 : i32
    %c0_i32_0 = arith.constant 0 : i32
    %c0_i32_1 = arith.constant 0 : i32
    return %arg0, %c0_i32, %c0_i32_0 : i32, i32, i32
  }
  func.func @transform_2(%arg0: i32) -> (i32, i32) {
    %c0_i32 = arith.constant 0 : i32
    %c0_i32_0 = arith.constant 0 : i32
    %c0_i32_1 = arith.constant 0 : i32
    return %c0_i32, %c0_i32_0 : i32, i32
  }
  func.func @transform_3(%arg0: i32) -> (i32, i32) {
    %c0_i32 = arith.constant 0 : i32
    %c0_i32_0 = arith.constant 0 : i32
    %c0_i32_1 = arith.constant 0 : i32
    return %c0_i32, %c0_i32_0 : i32, i32
  }
  func.func @transform_4(%arg0: i32) -> (i32, i32) {
    %c0_i32 = arith.constant 0 : i32
    %c0_i32_0 = arith.constant 0 : i32
    %c0_i32_1 = arith.constant 0 : i32
    return %c0_i32, %c0_i32_0 : i32, i32
  }
  func.func @transform_5(%arg0: i32) -> (i32, i32) {
    %c0_i32 = arith.constant 0 : i32
    %c0_i32_0 = arith.constant 0 : i32
    %c0_i32_1 = arith.constant 0 : i32
    return %c0_i32, %c0_i32_0 : i32, i32
  }
  func.func @transform_6(%arg0: i32) -> (i32, i32) {
    %c0_i32 = arith.constant 0 : i32
    %c0_i32_0 = arith.constant 0 : i32
    %c0_i32_1 = arith.constant 0 : i32
    return %c0_i32, %c0_i32_0 : i32, i32
  }
  func.func @transform_7(%arg0: i32) -> (i32, i32, i32) {
    %c0_i32 = arith.constant 0 : i32
    %c0_i32_0 = arith.constant 0 : i32
    %c0_i32_1 = arith.constant 0 : i32
    return %arg0, %c0_i32, %c0_i32_0 : i32, i32, i32
  }
}

</mosaic_0001>

<llo_original>
// kernel: tpu_custom_call.1
$region0: #{tpu_custom_call.1}
  #allocation0 [shape = 'u32[]', space=smem, size = 0x4, offset = 0x4, fixed_abs, tag = 'smem constant byte address 0x4 - core index']
  #allocation1 [shape = 'u32[144,128]{1,0:T(1,128)}', space=vmem, size = 0x12000, scoped, tag = 'internal scratch']
  %s0 = inlined_call_operand.hbm [shape: f32[8,8,32], index: 0, kind: input, shape index: {}]
  %s1 = inlined_call_operand.vmem [shape: f32[8,1,64], index: 1, kind: input, shape index: {}]
  %s2 = inlined_call_operand.vmem [shape: f32[1,32], index: 2, kind: input, shape index: {}]
  %s3 = inlined_call_operand.vmem [shape: f32[1,32], index: 3, kind: input, shape index: {}]
  %s4 = inlined_call_operand.vmem [shape: bf16[32,192], index: 4, kind: input, shape index: {}]
  %s5 = inlined_call_operand.vmem [shape: bf16[64,32], index: 5, kind: input, shape index: {}]
  %s6 = inlined_call_operand.vmem [shape: f32[1,32], index: 6, kind: input, shape index: {}]
  %s7 = inlined_call_operand.hbm [shape: f32[8,8,32], index: 7, kind: output, shape index: {}]
  %s8 = sld [smem:[#allocation0]]
  $region65: #{tpu_custom_call.1} parent=0
    _
  %s10 = ssub.s32 1, %s8
  %s11 = scalar_select 0, %s10, %s8
  $region1: #{tpu_custom_call.1} parent=0
    #allocation2 [shape = 'u8[32768]{0}', space=vmem, size = 0x8000, scoped, tag = 'input window, operand 0']
    #allocation3 [shape = 's32[2]{0}', space=sflag, size = 0x8, scoped, tag = 'scoped memory for tpu_custom_call.1']
    #allocation4 [shape = 's32[2]{0}', space=sflag, size = 0x8, scoped, tag = 'scoped memory for tpu_custom_call.1']
    #allocation5 [shape = 'u8[32768]{0}', space=vmem, size = 0x8000, scoped, tag = 'output window, operand 0']
    %12 = vsyncpa [#allocation3], 0
    %s13 = scalar_lea.sflag [#allocation3], 1
    %14 = vsyncpa %s13, 0
    %15 = vsyncpa [#allocation4], 0
    %s16 = scalar_lea.sflag [#allocation4], 1
    %17 = vsyncpa %s16, 0
    loop: start=0, step=1, limit=4
    $region2: #{tpu_custom_call.1} parent=1 // loop_pre_header
      _
    $region3: #{tpu_custom_call.1} parent=1 // loop_header
      %s19 = sphi 0, %s23
      %p20 = scmp.ge.s32.totalorder %s19, 4
      %s29 = sphi 0, %s31
      %s32 = sphi 0, %s29
      %s33 = sphi 0, %s32
      %s49 = sphi 0, %s33
      %s55 = sphi 0, %s57
      %s58 = sphi 0, %s55
      %s59 = sphi 0, %s58
      %s75 = sphi 0, %s59
      %s79 = sphi 0, %s79
      %s81 = sphi 0, %s79
      %s82 = sphi 0, %s81
      %s96 = sphi 0, %s82
      %s100 = sphi 0, %s100
      %s102 = sphi 0, %s100
      %s103 = sphi 0, %s102
      %s117 = sphi 0, %s103
      %s121 = sphi 0, %s121
      %s123 = sphi 0, %s121
      %s124 = sphi 0, %s123
      %s138 = sphi 0, %s124
      %s142 = sphi 0, %s142
      %s144 = sphi 0, %s142
      %s145 = sphi 0, %s144
      %s159 = sphi 0, %s145
      %s163 = sphi 0, %s163
      %s165 = sphi 0, %s163
      %s166 = sphi 0, %s165
      %s180 = sphi 0, %s166
      %s186 = sphi 0, %s188
      %s189 = sphi 0, %s186
      %s190 = sphi 0, %s189
      %s206 = sphi 0, %s190
    $region4: #{tpu_custom_call.1} parent=1 // loop_header_branch
      %22 = sbr.rel (%p20) target = $region8
    $region5: #{tpu_custom_call.1} parent=1 // loop_body
      %s24 = ssub.s32 %s19, 1
      %s25 = ssub.s32 %s19, 2
      %s26 = sadd.s32 %s19, 1
      %s27 = ssub.s32 %s19, %s26
      %p28 = scmp.eq.s32.totalorder %s27, 0
      %s30 = sadd.s32 %s29, 1
      %s31 = scalar_select %p28, %s29, %s30
      %p34 = pneg %p28
      %p35 = scmp.eq.s32.totalorder %s19, 1
      %p36 = por %p34, %p35
      %p37 = scmp.ne.s32.totalorder %s29, %s32
      %p38 = scmp.eq.s32.totalorder %s19, 0
      %p39 = por %p37, %p38
      %p40 = scmp.ne.s32.totalorder %s29, %s32
      %p41 = scmp.eq.s32.totalorder %s24, 1
      %p42 = por %p40, %p41
      %p43 = scmp.ne.s32.totalorder %s32, %s33
      %p44 = scmp.eq.s32.totalorder %s24, 0
      %p45 = por %p43, %p44
      %p46 = scmp.ne.s32.totalorder %s32, %s33
      %p47 = scmp.eq.s32.totalorder %s25, 1
      %p48 = por %p46, %p47
      %p50 = scmp.ne.s32.totalorder %s33, %s49
      %p51 = scmp.eq.s32.totalorder %s25, 0
      %p52 = por %p50, %p51
      %s53 = ssub.s32 %s19, %s26
      %p54 = scmp.eq.s32.totalorder %s53, 0
      %s56 = sadd.s32 %s55, 1
      %s57 = scalar_select %p54, %s55, %s56
      %p60 = pneg %p54
      %p61 = scmp.eq.s32.totalorder %s19, 1
      %p62 = por %p60, %p61
      %p63 = scmp.ne.s32.totalorder %s55, %s58
      %p64 = scmp.eq.s32.totalorder %s19, 0
      %p65 = por %p63, %p64
      %p66 = scmp.ne.s32.totalorder %s55, %s58
      %p67 = scmp.eq.s32.totalorder %s24, 1
      %p68 = por %p66, %p67
      %p69 = scmp.ne.s32.totalorder %s58, %s59
      %p70 = scmp.eq.s32.totalorder %s24, 0
      %p71 = por %p69, %p70
      %p72 = scmp.ne.s32.totalorder %s58, %s59
      %p73 = scmp.eq.s32.totalorder %s25, 1
      %p74 = por %p72, %p73
      %p76 = scmp.ne.s32.totalorder %s59, %s75
      %p77 = scmp.eq.s32.totalorder %s25, 0
      %p78 = por %p76, %p77
      %s80 = sadd.s32 %s79, 1
      %p83 = scmp.eq.s32.totalorder %s19, 1
      %p84 = scmp.ne.s32.totalorder %s79, %s81
      %p85 = scmp.eq.s32.totalorder %s19, 0
      %p86 = por %p84, %p85
      %p87 = scmp.ne.s32.totalorder %s79, %s81
      %p88 = scmp.eq.s32.totalorder %s24, 1
      %p89 = por %p87, %p88
      %p90 = scmp.ne.s32.totalorder %s81, %s82
      %p91 = scmp.eq.s32.totalorder %s24, 0
      %p92 = por %p90, %p91
      %p93 = scmp.ne.s32.totalorder %s81, %s82
      %p94 = scmp.eq.s32.totalorder %s25, 1
      %p95 = por %p93, %p94
      %p97 = scmp.ne.s32.totalorder %s82, %s96
      %p98 = scmp.eq.s32.totalorder %s25, 0
      %p99 = por %p97, %p98
      %s101 = sadd.s32 %s100, 1
      %p104 = scmp.eq.s32.totalorder %s19, 1
      %p105 = scmp.ne.s32.totalorder %s100, %s102
      %p106 = scmp.eq.s32.totalorder %s19, 0
      %p107 = por %p105, %p106
      %p108 = scmp.ne.s32.totalorder %s100, %s102
      %p109 = scmp.eq.s32.totalorder %s24, 1
      %p110 = por %p108, %p109
      %p111 = scmp.ne.s32.totalorder %s102, %s103
      %p112 = scmp.eq.s32.totalorder %s24, 0
      %p113 = por %p111, %p112
      %p114 = scmp.ne.s32.totalorder %s102, %s103
      %p115 = scmp.eq.s32.totalorder %s25, 1
      %p116 = por %p114, %p115
      %p118 = scmp.ne.s32.totalorder %s103, %s117
      %p119 = scmp.eq.s32.totalorder %s25, 0
      %p120 = por %p118, %p119
      %s122 = sadd.s32 %s121, 1
      %p125 = scmp.eq.s32.totalorder %s19, 1
      %p126 = scmp.ne.s32.totalorder %s121, %s123
      %p127 = scmp.eq.s32.totalorder %s19, 0
      %p128 = por %p126, %p127
      %p129 = scmp.ne.s32.totalorder %s121, %s123
      %p130 = scmp.eq.s32.totalorder %s24, 1
      %p131 = por %p129, %p130
      %p132 = scmp.ne.s32.totalorder %s123, %s124
      %p133 = scmp.eq.s32.totalorder %s24, 0
      %p134 = por %p132, %p133
      %p135 = scmp.ne.s32.totalorder %s123, %s124
      %p136 = scmp.eq.s32.totalorder %s25, 1
      %p137 = por %p135, %p136
      %p139 = scmp.ne.s32.totalorder %s124, %s138
      %p140 = scmp.eq.s32.totalorder %s25, 0
      %p141 = por %p139, %p140
      %s143 = sadd.s32 %s142, 1
      %p146 = scmp.eq.s32.totalorder %s19, 1
      %p147 = scmp.ne.s32.totalorder %s142, %s144
      %p148 = scmp.eq.s32.totalorder %s19, 0
      %p149 = por %p147, %p148
      %p150 = scmp.ne.s32.totalorder %s142, %s144
      %p151 = scmp.eq.s32.totalorder %s24, 1
      %p152 = por %p150, %p151
      %p153 = scmp.ne.s32.totalorder %s144, %s145
      %p154 = scmp.eq.s32.totalorder %s24, 0
      %p155 = por %p153, %p154
      %p156 = scmp.ne.s32.totalorder %s144, %s145
      %p157 = scmp.eq.s32.totalorder %s25, 1
      %p158 = por %p156, %p157
      %p160 = scmp.ne.s32.totalorder %s145, %s159
      %p161 = scmp.eq.s32.totalorder %s25, 0
      %p162 = por %p160, %p161
      %s164 = sadd.s32 %s163, 1
      %p167 = scmp.eq.s32.totalorder %s19, 1
      %p168 = scmp.ne.s32.totalorder %s163, %s165
      %p169 = scmp.eq.s32.totalorder %s19, 0
      %p170 = por %p168, %p169
      %p171 = scmp.ne.s32.totalorder %s163, %s165
      %p172 = scmp.eq.s32.totalorder %s24, 1
      %p173 = por %p171, %p172
      %p174 = scmp.ne.s32.totalorder %s165, %s166
      %p175 = scmp.eq.s32.totalorder %s24, 0
      %p176 = por %p174, %p175
      %p177 = scmp.ne.s32.totalorder %s165, %s166
      %p178 = scmp.eq.s32.totalorder %s25, 1
      %p179 = por %p177, %p178
      %p181 = scmp.ne.s32.totalorder %s166, %s180
      %p182 = scmp.eq.s32.totalorder %s25, 0
      %p183 = por %p181, %p182
      %s184 = ssub.s32 %s19, %s26
      %p185 = scmp.eq.s32.totalorder %s184, 0
      %s187 = sadd.s32 %s186, 1
      %s188 = scalar_select %p185, %s186, %s187
      %p191 = pneg %p185
      %p192 = scmp.eq.s32.totalorder %s19, 1
      %p193 = por %p191, %p192
      %p194 = scmp.ne.s32.totalorder %s186, %s189
      %p195 = scmp.eq.s32.totalorder %s19, 0
      %p196 = por %p194, %p195
      %p197 = scmp.ne.s32.totalorder %s186, %s189
      %p198 = scmp.eq.s32.totalorder %s24, 1
      %p199 = por %p197, %p198
      %p200 = scmp.ne.s32.totalorder %s189, %s190
      %p201 = scmp.eq.s32.totalorder %s24, 0
      %p202 = por %p200, %p201
      %p203 = scmp.ne.s32.totalorder %s189, %s190
      %p204 = scmp.eq.s32.totalorder %s25, 1
      %p205 = por %p203, %p204
      %p207 = scmp.ne.s32.totalorder %s190, %s206
      %p208 = scmp.eq.s32.totalorder %s25, 0
      %p209 = por %p207, %p208
      %p210 = scmp.le.s32.totalorder 1, %s19
      %p211 = scmp.lt.s32.totalorder %s19, 3
      %p212 = pnand %p210, %p211
      %p213 = pneg %p212
      // Predicated region
      $region9: #{tpu_custom_call.1} parent=5 // pred_check
        _
      $region10: #{tpu_custom_call.1} parent=5 // pred_check_branch
        %215 = sbr.rel (%p212) target = $region12
      $region11: #{tpu_custom_call.1} parent=5 // pred_region
        %s216 = ssub.s32 %s19, 1
        // Predicated region
        $region13: #{tpu_custom_call.1} parent=11 // pred_check
          %p217 = pneg %p92
        $region14: #{tpu_custom_call.1} parent=11 // pred_check_branch
          %219 = sbr.rel (%p217) target = $region16
        $region15: #{tpu_custom_call.1} parent=11 // pred_region
          _
        $region16: #{tpu_custom_call.1} parent=11 // pred_fallthru
          _
        // Predicated region
        $region17: #{tpu_custom_call.1} parent=11 // pred_check
          %p220 = pneg %p113
        $region18: #{tpu_custom_call.1} parent=11 // pred_check_branch
          %222 = sbr.rel (%p220) target = $region20
        $region19: #{tpu_custom_call.1} parent=11 // pred_region
          _
        $region20: #{tpu_custom_call.1} parent=11 // pred_fallthru
          _
        // Predicated region
        $region21: #{tpu_custom_call.1} parent=11 // pred_check
          %p223 = pneg %p134
        $region22: #{tpu_custom_call.1} parent=11 // pred_check_branch
          %225 = sbr.rel (%p223) target = $region24
        $region23: #{tpu_custom_call.1} parent=11 // pred_region
          _
        $region24: #{tpu_custom_call.1} parent=11 // pred_fallthru
          _
        // Predicated region
        $region25: #{tpu_custom_call.1} parent=11 // pred_check
          %p226 = pneg %p155
        $region26: #{tpu_custom_call.1} parent=11 // pred_check_branch
          %228 = sbr.rel (%p226) target = $region28
        $region27: #{tpu_custom_call.1} parent=11 // pred_region
          _
        $region28: #{tpu_custom_call.1} parent=11 // pred_fallthru
          _
        // Predicated region
        $region29: #{tpu_custom_call.1} parent=11 // pred_check
          %p229 = pneg %p176
        $region30: #{tpu_custom_call.1} parent=11 // pred_check_branch
          %231 = sbr.rel (%p229) target = $region32
        $region31: #{tpu_custom_call.1} parent=11 // pred_region
          _
        $region32: #{tpu_custom_call.1} parent=11 // pred_fallthru
          _
      $region12: #{tpu_custom_call.1} parent=5 // pred_fallthru
        _
      %p232 = scmp.lt.s32.totalorder %s19, 2
      // Predicated region
      $region33: #{tpu_custom_call.1} parent=5 // pred_check
        %p233 = pneg %p232
      $region34: #{tpu_custom_call.1} parent=5 // pred_check_branch
        %235 = sbr.rel (%p233) target = $region36
      $region35: #{tpu_custom_call.1} parent=5 // pred_region
        // Predicated region
        $region37: #{tpu_custom_call.1} parent=35 // pred_check
          %p236 = pneg %p39
        $region38: #{tpu_custom_call.1} parent=35 // pred_check_branch
          %238 = sbr.rel (%p236) target = $region40
        $region39: #{tpu_custom_call.1} parent=35 // pred_region
          %s239 = sand.u32 %s29, 1
          %s240 = scalar_lea.sflag [#allocation3], %s239
          %s241 = sand.u32 %s29, 1
          %s242 = smul.addr %s241, 32
          %s243 = scalar_lea.vmem [#allocation2], %s242
          %s244 = smul.u32 4, %s19
          %s246 = ssub.s32 512, 512
          %247 = vsyncadd %s240, %s246
          %s248 = smul.addr %s244, 128
          %s249 = scalar_lea.hbm %s0, %s248
          %s250 = sshll.u32 %s243, 4
          %s251 = int_to_ptr.vmem [resolvable:$true] %s250
          %256 = dma.hbm_to_vmem [thread:$0]  %s249, 512, %s251, %s240, 128, 128, 8
        $region40: #{tpu_custom_call.1} parent=35 // pred_fallthru
          _
        // Predicated region
        $region41: #{tpu_custom_call.1} parent=35 // pred_check
          %p257 = pneg %p65
        $region42: #{tpu_custom_call.1} parent=35 // pred_check_branch
          %259 = sbr.rel (%p257) target = $region44
        $region43: #{tpu_custom_call.1} parent=35 // pred_region
          %s260 = smul.u32 4, %s19
          %p261 = scmp.lt.s32.totalorder %s260, 7
          %s262 = scalar_select %p261, %s260, 7
          %s263 = scalar_lea.vmem %s1, %s262
          %s264 = smul.u32 4, %s19
        $region44: #{tpu_custom_call.1} parent=35 // pred_fallthru
          _
      $region36: #{tpu_custom_call.1} parent=5 // pred_fallthru
        _
      %p265 = scmp.le.s32.totalorder 1, %s19
      %p266 = scmp.lt.s32.totalorder %s19, 3
      %p267 = pnand %p265, %p266
      %p268 = pneg %p267
      // Predicated region
      $region45: #{tpu_custom_call.1} parent=5 // pred_check
        _
      $region46: #{tpu_custom_call.1} parent=5 // pred_check_branch
        %270 = sbr.rel (%p267) target = $region48
      $region47: #{tpu_custom_call.1} parent=5 // pred_region
        %s271 = ssub.s32 %s19, 1
        %s272 = sand.u32 %s32, 1
        %s273 = scalar_lea.sflag [#allocation3], %s272
        %s274 = sand.u32 %s32, 1
        %s275 = smul.addr %s274, 32
        %s276 = scalar_lea.vmem [#allocation2], %s275
        // Predicated region
        $region49: #{tpu_custom_call.1} parent=47 // pred_check
          %p277 = pneg %p45
        $region50: #{tpu_custom_call.1} parent=47 // pred_check_branch
          %279 = sbr.rel (%p277) target = $region52
        $region51: #{tpu_custom_call.1} parent=47 // pred_region
          %280 = dma.done %s273, 512
        $region52: #{tpu_custom_call.1} parent=47 // pred_fallthru
          _
        %s281 = sand.u32 %s32, 1
        %s282 = scalar_lea.sflag [#allocation3], %s281
        %s283 = sand.u32 %s32, 1
        %s284 = smul.addr %s283, 32
        %s285 = scalar_lea.vmem [#allocation2], %s284
        %p286 = pneg %p45
        %p287 = pneg %p42
        %s288 = smul.u32 4, %s24
        %p289 = scmp.lt.s32.totalorder %s288, 7
        %s290 = scalar_select %p289, %s288, 7
        %s291 = scalar_lea.vmem %s1, %s290
        %p292 = pneg %p71
        %p293 = pneg %p68
        %p294 = pneg %p92
        %p295 = pneg %p89
        %p296 = pneg %p113
        %p297 = pneg %p110
        %p298 = pneg %p134
        %p299 = pneg %p131
        %p300 = pneg %p155
        %p301 = pneg %p152
        %p302 = pneg %p176
        %p303 = pneg %p173
        %p304 = pneg %p202
        %p305 = pneg %p199
        %s306 = sand.u32 %s189, 1
        %s307 = scalar_lea.sflag [#allocation4], %s306
        %s308 = sand.u32 %s189, 1
        %s309 = smul.addr %s308, 32
        %s310 = scalar_lea.vmem [#allocation5], %s309
        %s311 = smul.u32 4, %s24
        %s312 = smul.u32 4, %s24
        %p313 = scmp.lt.s32.totalorder %s312, 7
        %s314 = scalar_select %p313, %s312, 7
        %s315 = scalar_lea.vmem %s1, %s314
        %s316 = smul.u32 4, %s24
        %s317 = smul.u32 4, %s24
        %v319 = vld [vmem:[%s276] sm:$0xff]
        %v320 = vld [vmem:[%s276 + $0x8] sm:$0xff]
        %v321 = vld [vmem:[%s276 + $0x10] sm:$0xff]
        %v322 = vld [vmem:[%s276 + $0x18] sm:$0xff]
        %vm323 = vcmask 261120
        %v324 = vsel %vm323, %v319, 0.0
        %325 = vadd.xlane.f32.xlu0 %v324
        %v326 = vpop.xlane.xlu0 %325
        %v327 = vsel %vm323, %v320, 0.0
        %328 = vadd.xlane.f32.xlu0 %v327
        %v329 = vpop.xlane.xlu0 %328
        %v330 = vsel %vm323, %v321, 0.0
        %331 = vadd.xlane.f32.xlu0 %v330
        %v332 = vpop.xlane.xlu0 %331
        %v333 = vsel %vm323, %v322, 0.0
        %334 = vadd.xlane.f32.xlu0 %v333
        %v335 = vpop.xlane.xlu0 %334
        %v336 = vmul.f32 %v319, %v319
        %v337 = vmul.f32 %v320, %v320
        %v338 = vmul.f32 %v321, %v321
        %v339 = vmul.f32 %v322, %v322
        %v340 = vsel %vm323, %v336, 0.0
        %341 = vadd.xlane.f32.xlu0 %v340
        %v342 = vpop.xlane.xlu0 %341
        %v343 = vsel %vm323, %v337, 0.0
        %344 = vadd.xlane.f32.xlu0 %v343
        %v345 = vpop.xlane.xlu0 %344
        %v346 = vsel %vm323, %v338, 0.0
        %347 = vadd.xlane.f32.xlu0 %v346
        %v348 = vpop.xlane.xlu0 %347
        %v349 = vsel %vm323, %v339, 0.0
        %350 = vadd.xlane.f32.xlu0 %v349
        %v351 = vpop.xlane.xlu0 %350
        %v352 = vmul.f32 %v326, 0.03125
        %v353 = vmul.f32 %v329, 0.03125
        %v354 = vmul.f32 %v332, 0.03125
        %v355 = vmul.f32 %v335, 0.03125
        %v356 = vmul.f32 %v342, 0.03125
        %v357 = vmul.f32 %v345, 0.03125
        %v358 = vmul.f32 %v348, 0.03125
        %v359 = vmul.f32 %v351, 0.03125
        %v360 = vmul.f32 %v352, %v352
        %v361 = vmul.f32 %v353, %v353
        %v362 = vmul.f32 %v354, %v354
        %v363 = vmul.f32 %v355, %v355
        %v364 = vsub.f32 %v356, %v360
        %v365 = vsub.f32 %v357, %v361
        %v366 = vsub.f32 %v358, %v362
        %v367 = vsub.f32 %v359, %v363
        %v368 = vsub.f32 %v319, %v352
        %v369 = vsub.f32 %v320, %v353
        %v370 = vsub.f32 %v321, %v354
        %v371 = vsub.f32 %v322, %v355
        %v372 = vadd.f32 %v364, 1e-05
        %v373 = vadd.f32 %v365, 1e-05
        %v374 = vadd.f32 %v366, 1e-05
        %v375 = vadd.f32 %v367, 1e-05
        %v376 = vrsqrt.pop %v372
        %v377 = vrsqrt.pop %v373
        %v378 = vrsqrt.pop %v374
        %v379 = vrsqrt.pop %v375
        %v380 = vmul.f32 %v368, %v376
        %v381 = vmul.f32 %v369, %v377
        %v382 = vmul.f32 %v370, %v378
        %v383 = vmul.f32 %v371, %v379
        %v384 = vld [vmem:[%s2] sm:$0x1]
        %v386 = vlaneseq
        %v387 = vshrl.u32 %v386, 7
        %v388 = vsub.s32 0, %v387
        %v389 = vrot.slane %v384, %v388
        %v391 = vmul.f32 %v380, %v389
        %v392 = vmul.f32 %v381, %v389
        %v393 = vmul.f32 %v382, %v389
        %v394 = vmul.f32 %v383, %v389
        %v395 = vld [vmem:[%s3] sm:$0x1]
        %v397 = vlaneseq
        %v398 = vshrl.u32 %v397, 7
        %v399 = vsub.s32 0, %v398
        %v400 = vrot.slane %v395, %v399
        %v402 = vadd.f32 %v391, %v400
        %v403 = vadd.f32 %v392, %v400
        %v404 = vadd.f32 %v393, %v400
        %v405 = vadd.f32 %v394, %v400
        %v406 = vpack.c.bf16 %v403, %v402
        %v407 = vpack.c.bf16 %v405, %v404
        %v408 = vld [vmem:[%s4] sm:$0xff]
        %v409 = vld [vmem:[%s4 + $0x8] sm:$0xff]
        %v410 = vld [vmem:[%s4 + $0x10] sm:$0xff]
        %v411 = vld [vmem:[%s4 + $0x18] sm:$0xff]
        %v416 = vunpack.c.l.b16 %v408
        %v417 = vunpack.c.h.b16 %v408
        %v418 = vunpack.c.l.b16 %v409
        %v419 = vunpack.c.h.b16 %v409
        %v420 = vunpack.c.l.b16 %v410
        %v421 = vunpack.c.h.b16 %v410
        %v422 = vunpack.c.l.b16 %v411
        %v423 = vunpack.c.h.b16 %v411
        %v424 = vpack.c.b16 %v418, %v416
        %v425 = vpack.c.b16 %v419, %v417
        %v426 = vpack.c.b16 %v422, %v420
        %v427 = vpack.c.b16 %v423, %v421
        %v433 = vsel %vm323, %v406, 0
        %v436 = vsel %vm323, %v407, 0
        %438 = vmatprep.subr.bf16.mxu0 %v425
        %439 = vmatpush1.bf16.msra.mxu0 %v424
        %440 = vmatprep.subr.bf16.mxu0 %v427
        %441 = vmatpush1.bf16.msra.mxu0 %v426
        %442 = vmatprep.subr.bf16.mxu0 0
        %443 = vmatpush1.bf16.msra.mxu0 0
        %444 = vmatprep.subr.bf16.mxu0 0
        %445 = vmatpush1.bf16.msra.mxu0 0
        %446 = vmatprep.subr.bf16.mxu0 0
        %447 = vmatpush1.bf16.msra.mxu0 0
        %448 = vmatprep.subr.bf16.mxu0 0
        %449 = vmatpush1.bf16.msra.mxu0 0
        %450 = vmatprep.subr.bf16.mxu0 0
        %451 = vmatpush1.bf16.msra.mxu0 0
        %452 = vmatprep.subr.bf16.mxu0 0
        %453 = vmatpush1.bf16.msra.mxu0 0
        %454 = vmatprep.subr.bf16.mxu0 0
        %455 = vmatpush1.bf16.msra.mxu0 0
        %456 = vmatprep.subr.bf16.mxu0 0
        %457 = vmatpush1.bf16.msra.mxu0 0
        %458 = vmatprep.subr.bf16.mxu0 0
        %459 = vmatpush1.bf16.msra.mxu0 0
        %460 = vmatprep.subr.bf16.mxu0 0
        %461 = vmatpush1.bf16.msra.mxu0 0
        %462 = vmatprep.subr.bf16.mxu0 0
        %463 = vmatpush1.bf16.msra.mxu0 0
        %464 = vmatprep.subr.bf16.mxu0 0
        %465 = vmatpush1.bf16.msra.mxu0 0
        %466 = vmatprep.subr.bf16.mxu0 0
        %467 = vmatpush1.bf16.msra.mxu0 0
        %468 = vmatprep.subr.bf16.mxu0 0
        %469 = vmatpush1.bf16.msra.mxu0 0
        %470 = vmatprep.mubr.bf16.mxu0 0
        %471 = vmatmul.mubr.bf16.gmra.mrb[0].mxu0 %v433
        %v472 = vpop.f32.mrb[0].mxu0
        %v473 = vadd.f32 0.0, %v472
        %v474 = vpop.f32.mrb[0].mxu0
        %v475 = vadd.f32 0.0, %v474
        %v476 = vpop.f32.mrb[0].mxu0
        %v477 = vadd.f32 0.0, %v476
        %v478 = vpop.f32.mrb[0].mxu0
        %v479 = vadd.f32 0.0, %v478
        %480 = vmatprep.mubr.bf16.mxu0 0
        %481 = vmatmul.mubr.bf16.gmra.mrb[0].mxu0 %v436
        %v482 = vpop.f32.mrb[0].mxu0
        %v483 = vadd.f32 0.0, %v482
        %v484 = vpop.f32.mrb[0].mxu0
        %v485 = vadd.f32 0.0, %v484
        %v486 = vpop.f32.mrb[0].mxu0
        %v487 = vadd.f32 0.0, %v486
        %v488 = vpop.f32.mrb[0].mxu0
        %v489 = vadd.f32 0.0, %v488
        %490 = vdwg.mxu0
        %v491 = vld [vmem:[%s315] sm:$0x1]
        %v492 = vld [vmem:[%s315 + $0x1] sm:$0x1]
        %v493 = vld [vmem:[%s315 + $0x2] sm:$0x1]
        %v494 = vld [vmem:[%s315 + $0x3] sm:$0x1]
        %v499 = vlaneseq
        %v500 = vshrl.u32 %v499, 7
        %v501 = vsub.s32 0, %v500
        %v502 = vrot.slane %v491, %v501
        %v503 = vlaneseq
        %v504 = vshrl.u32 %v503, 7
        %v505 = vsub.s32 0, %v504
        %v506 = vrot.slane %v492, %v505
        %v507 = vlaneseq
        %v508 = vshrl.u32 %v507, 7
        %v509 = vsub.s32 0, %v508
        %v510 = vrot.slane %v493, %v509
        %v511 = vlaneseq
        %v512 = vshrl.u32 %v511, 7
        %v513 = vsub.s32 0, %v512
        %v514 = vrot.slane %v494, %v513
        %v519 = vadd.f32 %v473, %v502
        %v520 = vadd.f32 %v477, %v506
        %v521 = vadd.f32 %v483, %v510
        %v522 = vadd.f32 %v487, %v514
        %v523 = vpack.c.bf16 %v519, %v519
        %v524 = vpack.c.bf16 %v520, %v520
        %v525 = vpack.c.bf16 %v521, %v521
        %v526 = vpack.c.bf16 %v522, %v522
        %v527 = vpack.c.bf16 %v473, %v473
        %v528 = vpack.c.bf16 %v477, %v477
        %v529 = vpack.c.bf16 %v483, %v483
        %v530 = vpack.c.bf16 %v487, %v487
        %v531 = vpack.c.bf16 %v475, %v475
        %v532 = vpack.c.bf16 %v479, %v479
        %v533 = vpack.c.bf16 %v485, %v485
        %v534 = vpack.c.bf16 %v489, %v489
        %536 = vrot.lane.b32.xlu0 %v527, 64
        %v537 = vpop.permute.xlu0 %536
        %vm538 = vcmask 130048
        %v540 = vsel %vm538, %v523, 0
        %v543 = vsel %vm538, %v537, 0
        %545 = vmatprep.subr.bf16.mxu0 0
        %546 = vmatpush1.bf16.xpose.msra.mxu0 %v543
        %547 = vmatprep.subr.bf16.mxu0 0
        %548 = vmatpush1.bf16.xpose.msra.mxu0 0
        %549 = vmatprep.subr.bf16.mxu0 0
        %550 = vmatpush1.bf16.xpose.msra.mxu0 0
        %551 = vmatprep.subr.bf16.mxu0 0
        %552 = vmatpush1.bf16.xpose.msra.mxu0 0
        %553 = vmatprep.subr.bf16.mxu0 0
        %554 = vmatpush1.bf16.xpose.msra.mxu0 0
        %555 = vmatprep.subr.bf16.mxu0 0
        %556 = vmatpush1.bf16.xpose.msra.mxu0 0
        %557 = vmatprep.subr.bf16.mxu0 0
        %558 = vmatpush1.bf16.xpose.msra.mxu0 0
        %559 = vmatprep.subr.bf16.mxu0 0
        %560 = vmatpush1.bf16.xpose.msra.mxu0 0
        %561 = vmatprep.subr.bf16.mxu0 0
        %562 = vmatpush1.bf16.xpose.msra.mxu0 0
        %563 = vmatprep.subr.bf16.mxu0 0
        %564 = vmatpush1.bf16.xpose.msra.mxu0 0
        %565 = vmatprep.subr.bf16.mxu0 0
        %566 = vmatpush1.bf16.xpose.msra.mxu0 0
        %567 = vmatprep.subr.bf16.mxu0 0
        %568 = vmatpush1.bf16.xpose.msra.mxu0 0
        %569 = vmatprep.subr.bf16.mxu0 0
        %570 = vmatpush1.bf16.xpose.msra.mxu0 0
        %571 = vmatprep.subr.bf16.mxu0 0
        %572 = vmatpush1.bf16.xpose.msra.mxu0 0
        %573 = vmatprep.subr.bf16.mxu0 0
        %574 = vmatpush1.bf16.xpose.msra.mxu0 0
        %575 = vmatprep.subr.bf16.mxu0 0
        %576 = vmatpush1.bf16.xpose.msra.mxu0 0
        %577 = vmatprep.mubr.bf16.mxu0 0
        %578 = vmatmul.mubr.bf16.gmra.mrb[0].mxu0 %v540
        %v579 = vpop.f32.mrb[0].mxu0
        %v580 = vadd.f32 0.0, %v579
        %v581 = vpop.f32.mrb[0].mxu0
        %v582 = vpop.f32.mrb[0].mxu0
        %v583 = vpop.f32.mrb[0].mxu0
        %584 = vdwg.mxu0
        %586 = vrot.lane.b32.xlu0 %v528, 64
        %v587 = vpop.permute.xlu0 %586
        %v589 = vsel %vm538, %v524, 0
        %v592 = vsel %vm538, %v587, 0
        %594 = vmatprep.subr.bf16.mxu0 0
        %595 = vmatpush1.bf16.xpose.msra.mxu0 %v592
        %596 = vmatprep.subr.bf16.mxu0 0
        %597 = vmatpush1.bf16.xpose.msra.mxu0 0
        %598 = vmatprep.subr.bf16.mxu0 0
        %599 = vmatpush1.bf16.xpose.msra.mxu0 0
        %600 = vmatprep.subr.bf16.mxu0 0
        %601 = vmatpush1.bf16.xpose.msra.mxu0 0
        %602 = vmatprep.subr.bf16.mxu0 0
        %603 = vmatpush1.bf16.xpose.msra.mxu0 0
        %604 = vmatprep.subr.bf16.mxu0 0
        %605 = vmatpush1.bf16.xpose.msra.mxu0 0
        %606 = vmatprep.subr.bf16.mxu0 0
        %607 = vmatpush1.bf16.xpose.msra.mxu0 0
        %608 = vmatprep.subr.bf16.mxu0 0
        %609 = vmatpush1.bf16.xpose.msra.mxu0 0
        %610 = vmatprep.subr.bf16.mxu0 0
        %611 = vmatpush1.bf16.xpose.msra.mxu0 0
        %612 = vmatprep.subr.bf16.mxu0 0
        %613 = vmatpush1.bf16.xpose.msra.mxu0 0
        %614 = vmatprep.subr.bf16.mxu0 0
        %615 = vmatpush1.bf16.xpose.msra.mxu0 0
        %616 = vmatprep.subr.bf16.mxu0 0
        %617 = vmatpush1.bf16.xpose.msra.mxu0 0
        %618 = vmatprep.subr.bf16.mxu0 0
        %619 = vmatpush1.bf16.xpose.msra.mxu0 0
        %620 = vmatprep.subr.bf16.mxu0 0
        %621 = vmatpush1.bf16.xpose.msra.mxu0 0
        %622 = vmatprep.subr.bf16.mxu0 0
        %623 = vmatpush1.bf16.xpose.msra.mxu0 0
        %624 = vmatprep.subr.bf16.mxu0 0
        %625 = vmatpush1.bf16.xpose.msra.mxu0 0
        %626 = vmatprep.mubr.bf16.mxu0 0
        %627 = vmatmul.mubr.bf16.gmra.mrb[0].mxu0 %v589
        %v628 = vpop.f32.mrb[0].mxu0
        %v629 = vadd.f32 0.0, %v628
        %v630 = vpop.f32.mrb[0].mxu0
        %v631 = vpop.f32.mrb[0].mxu0
        %v632 = vpop.f32.mrb[0].mxu0
        %633 = vdwg.mxu0
        %635 = vrot.lane.b32.xlu0 %v529, 64
        %v636 = vpop.permute.xlu0 %635
        %v638 = vsel %vm538, %v525, 0
        %v641 = vsel %vm538, %v636, 0
        %643 = vmatprep.subr.bf16.mxu0 0
        %644 = vmatpush1.bf16.xpose.msra.mxu0 %v641
        %645 = vmatprep.subr.bf16.mxu0 0
        %646 = vmatpush1.bf16.xpose.msra.mxu0 0
        %647 = vmatprep.subr.bf16.mxu0 0
        %648 = vmatpush1.bf16.xpose.msra.mxu0 0
        %649 = vmatprep.subr.bf16.mxu0 0
        %650 = vmatpush1.bf16.xpose.msra.mxu0 0
        %651 = vmatprep.subr.bf16.mxu0 0
        %652 = vmatpush1.bf16.xpose.msra.mxu0 0
        %653 = vmatprep.subr.bf16.mxu0 0
        %654 = vmatpush1.bf16.xpose.msra.mxu0 0
        %655 = vmatprep.subr.bf16.mxu0 0
        %656 = vmatpush1.bf16.xpose.msra.mxu0 0
        %657 = vmatprep.subr.bf16.mxu0 0
        %658 = vmatpush1.bf16.xpose.msra.mxu0 0
        %659 = vmatprep.subr.bf16.mxu0 0
        %660 = vmatpush1.bf16.xpose.msra.mxu0 0
        %661 = vmatprep.subr.bf16.mxu0 0
        %662 = vmatpush1.bf16.xpose.msra.mxu0 0
        %663 = vmatprep.subr.bf16.mxu0 0
        %664 = vmatpush1.bf16.xpose.msra.mxu0 0
        %665 = vmatprep.subr.bf16.mxu0 0
        %666 = vmatpush1.bf16.xpose.msra.mxu0 0
        %667 = vmatprep.subr.bf16.mxu0 0
        %668 = vmatpush1.bf16.xpose.msra.mxu0 0
        %669 = vmatprep.subr.bf16.mxu0 0
        %670 = vmatpush1.bf16.xpose.msra.mxu0 0
        %671 = vmatprep.subr.bf16.mxu0 0
        %672 = vmatpush1.bf16.xpose.msra.mxu0 0
        %673 = vmatprep.subr.bf16.mxu0 0
        %674 = vmatpush1.bf16.xpose.msra.mxu0 0
        %675 = vmatprep.mubr.bf16.mxu0 0
        %676 = vmatmul.mubr.bf16.gmra.mrb[0].mxu0 %v638
        %v677 = vpop.f32.mrb[0].mxu0
        %v678 = vadd.f32 0.0, %v677
        %v679 = vpop.f32.mrb[0].mxu0
        %v680 = vpop.f32.mrb[0].mxu0
        %v681 = vpop.f32.mrb[0].mxu0
        %682 = vdwg.mxu0
        %684 = vrot.lane.b32.xlu0 %v530, 64
        %v685 = vpop.permute.xlu0 %684
        %v687 = vsel %vm538, %v526, 0
        %v690 = vsel %vm538, %v685, 0
        %692 = vmatprep.subr.bf16.mxu0 0
        %693 = vmatpush1.bf16.xpose.msra.mxu0 %v690
        %694 = vmatprep.subr.bf16.mxu0 0
        %695 = vmatpush1.bf16.xpose.msra.mxu0 0
        %696 = vmatprep.subr.bf16.mxu0 0
        %697 = vmatpush1.bf16.xpose.msra.mxu0 0
        %698 = vmatprep.subr.bf16.mxu0 0
        %699 = vmatpush1.bf16.xpose.msra.mxu0 0
        %700 = vmatprep.subr.bf16.mxu0 0
        %701 = vmatpush1.bf16.xpose.msra.mxu0 0
        %702 = vmatprep.subr.bf16.mxu0 0
        %703 = vmatpush1.bf16.xpose.msra.mxu0 0
        %704 = vmatprep.subr.bf16.mxu0 0
        %705 = vmatpush1.bf16.xpose.msra.mxu0 0
        %706 = vmatprep.subr.bf16.mxu0 0
        %707 = vmatpush1.bf16.xpose.msra.mxu0 0
        %708 = vmatprep.subr.bf16.mxu0 0
        %709 = vmatpush1.bf16.xpose.msra.mxu0 0
        %710 = vmatprep.subr.bf16.mxu0 0
        %711 = vmatpush1.bf16.xpose.msra.mxu0 0
        %712 = vmatprep.subr.bf16.mxu0 0
        %713 = vmatpush1.bf16.xpose.msra.mxu0 0
        %714 = vmatprep.subr.bf16.mxu0 0
        %715 = vmatpush1.bf16.xpose.msra.mxu0 0
        %716 = vmatprep.subr.bf16.mxu0 0
        %717 = vmatpush1.bf16.xpose.msra.mxu0 0
        %718 = vmatprep.subr.bf16.mxu0 0
        %719 = vmatpush1.bf16.xpose.msra.mxu0 0
        %720 = vmatprep.subr.bf16.mxu0 0
        %721 = vmatpush1.bf16.xpose.msra.mxu0 0
        %722 = vmatprep.subr.bf16.mxu0 0
        %723 = vmatpush1.bf16.xpose.msra.mxu0 0
        %724 = vmatprep.mubr.bf16.mxu0 0
        %725 = vmatmul.mubr.bf16.gmra.mrb[0].mxu0 %v687
        %v726 = vpop.f32.mrb[0].mxu0
        %v727 = vadd.f32 0.0, %v726
        %v728 = vpop.f32.mrb[0].mxu0
        %v729 = vpop.f32.mrb[0].mxu0
        %v730 = vpop.f32.mrb[0].mxu0
        %731 = vdwg.mxu0
        %v732 = vmul.f32 %v580, 0.25
        %v733 = vmul.f32 %v629, 0.25
        %v734 = vmul.f32 %v678, 0.25
        %v735 = vmul.f32 %v727, 0.25
        %vm736 = vcmask 64512
        %v737 = vsel %vm736, %v732, -inf
        %738 = vmax.xlane.f32.xlu0 %v737
        %v739 = vpop.xlane.xlu0 %738
        %v740 = vsel %vm736, %v733, -inf
        %741 = vmax.xlane.f32.xlu0 %v740
        %v742 = vpop.xlane.xlu0 %741
        %v743 = vsel %vm736, %v734, -inf
        %744 = vmax.xlane.f32.xlu0 %v743
        %v745 = vpop.xlane.xlu0 %744
        %v746 = vsel %vm736, %v735, -inf
        %747 = vmax.xlane.f32.xlu0 %v746
        %v748 = vpop.xlane.xlu0 %747
        %v749 = vsub.f32 %v732, %v739
        %v750 = vsub.f32 %v733, %v742
        %v751 = vsub.f32 %v734, %v745
        %v752 = vsub.f32 %v735, %v748
        %v753 = vmul.f32 %v749, 1.442695
        %v754 = vpow.pop %v753
        %v755 = vmul.f32 %v750, 1.442695
        %v756 = vpow.pop %v755
        %v757 = vmul.f32 %v751, 1.442695
        %v758 = vpow.pop %v757
        %v759 = vmul.f32 %v752, 1.442695
        %v760 = vpow.pop %v759
        %v761 = vsel %vm736, %v754, 0.0
        %762 = vadd.xlane.f32.xlu0 %v761
        %v763 = vpop.xlane.xlu0 %762
        %v764 = vsel %vm736, %v756, 0.0
        %765 = vadd.xlane.f32.xlu0 %v764
        %v766 = vpop.xlane.xlu0 %765
        %v767 = vsel %vm736, %v758, 0.0
        %768 = vadd.xlane.f32.xlu0 %v767
        %v769 = vpop.xlane.xlu0 %768
        %v770 = vsel %vm736, %v760, 0.0
        %771 = vadd.xlane.f32.xlu0 %v770
        %v772 = vpop.xlane.xlu0 %771
        %v773 = vrcp.pop %v763
        %v774 = vrcp.pop %v766
        %v775 = vrcp.pop %v769
        %v776 = vrcp.pop %v772
        %v777 = vmul.f32 %v754, %v773
        %v778 = vmul.f32 %v756, %v774
        %v779 = vmul.f32 %v758, %v775
        %v780 = vmul.f32 %v760, %v776
        %v781 = vpack.c.bf16 %v777, %v777
        %v782 = vpack.c.bf16 %v778, %v778
        %v783 = vpack.c.bf16 %v779, %v779
        %v784 = vpack.c.bf16 %v780, %v780
        %v786 = vsel %vm736, %v781, 0
        %vm788 = vcmask 1043456
        %v790 = vsel %vm788, %v531, 0
        %792 = vmatprep.subr.bf16.mxu0 0
        %793 = vmatpush1.bf16.msra.mxu0 %v790
        %794 = vmatprep.subr.bf16.mxu0 0
        %795 = vmatpush1.bf16.msra.mxu0 0
        %796 = vmatprep.subr.bf16.mxu0 0
        %797 = vmatpush1.bf16.msra.mxu0 0
        %798 = vmatprep.subr.bf16.mxu0 0
        %799 = vmatpush1.bf16.msra.mxu0 0
        %800 = vmatprep.subr.bf16.mxu0 0
        %801 = vmatpush1.bf16.msra.mxu0 0
        %802 = vmatprep.subr.bf16.mxu0 0
        %803 = vmatpush1.bf16.msra.mxu0 0
        %804 = vmatprep.subr.bf16.mxu0 0
        %805 = vmatpush1.bf16.msra.mxu0 0
        %806 = vmatprep.subr.bf16.mxu0 0
        %807 = vmatpush1.bf16.msra.mxu0 0
        %808 = vmatprep.subr.bf16.mxu0 0
        %809 = vmatpush1.bf16.msra.mxu0 0
        %810 = vmatprep.subr.bf16.mxu0 0
        %811 = vmatpush1.bf16.msra.mxu0 0
        %812 = vmatprep.subr.bf16.mxu0 0
        %813 = vmatpush1.bf16.msra.mxu0 0
        %814 = vmatprep.subr.bf16.mxu0 0
        %815 = vmatpush1.bf16.msra.mxu0 0
        %816 = vmatprep.subr.bf16.mxu0 0
        %817 = vmatpush1.bf16.msra.mxu0 0
        %818 = vmatprep.subr.bf16.mxu0 0
        %819 = vmatpush1.bf16.msra.mxu0 0
        %820 = vmatprep.subr.bf16.mxu0 0
        %821 = vmatpush1.bf16.msra.mxu0 0
        %822 = vmatprep.subr.bf16.mxu0 0
        %823 = vmatpush1.bf16.msra.mxu0 0
        %824 = vmatprep.mubr.bf16.mxu0 0
        %825 = vmatmul.mubr.bf16.gmra.mrb[0].mxu0 %v786
        %v826 = vpop.f32.mrb[0].mxu0
        %v827 = vadd.f32 0.0, %v826
        %v828 = vpop.f32.mrb[0].mxu0
        %v829 = vpop.f32.mrb[0].mxu0
        %v830 = vpop.f32.mrb[0].mxu0
        %831 = vdwg.mxu0
        %v833 = vsel %vm736, %v782, 0
        %v836 = vsel %vm788, %v532, 0
        %838 = vmatprep.subr.bf16.mxu0 0
        %839 = vmatpush1.bf16.msra.mxu0 %v836
        %840 = vmatprep.subr.bf16.mxu0 0
        %841 = vmatpush1.bf16.msra.mxu0 0
        %842 = vmatprep.subr.bf16.mxu0 0
        %843 = vmatpush1.bf16.msra.mxu0 0
        %844 = vmatprep.subr.bf16.mxu0 0
        %845 = vmatpush1.bf16.msra.mxu0 0
        %846 = vmatprep.subr.bf16.mxu0 0
        %847 = vmatpush1.bf16.msra.mxu0 0
        %848 = vmatprep.subr.bf16.mxu0 0
        %849 = vmatpush1.bf16.msra.mxu0 0
        %850 = vmatprep.subr.bf16.mxu0 0
        %851 = vmatpush1.bf16.msra.mxu0 0
        %852 = vmatprep.subr.bf16.mxu0 0
        %853 = vmatpush1.bf16.msra.mxu0 0
        %854 = vmatprep.subr.bf16.mxu0 0
        %855 = vmatpush1.bf16.msra.mxu0 0
        %856 = vmatprep.subr.bf16.mxu0 0
        %857 = vmatpush1.bf16.msra.mxu0 0
        %858 = vmatprep.subr.bf16.mxu0 0
        %859 = vmatpush1.bf16.msra.mxu0 0
        %860 = vmatprep.subr.bf16.mxu0 0
        %861 = vmatpush1.bf16.msra.mxu0 0
        %862 = vmatprep.subr.bf16.mxu0 0
        %863 = vmatpush1.bf16.msra.mxu0 0
        %864 = vmatprep.subr.bf16.mxu0 0
        %865 = vmatpush1.bf16.msra.mxu0 0
        %866 = vmatprep.subr.bf16.mxu0 0
        %867 = vmatpush1.bf16.msra.mxu0 0
        %868 = vmatprep.subr.bf16.mxu0 0
        %869 = vmatpush1.bf16.msra.mxu0 0
        %870 = vmatprep.mubr.bf16.mxu0 0
        %871 = vmatmul.mubr.bf16.gmra.mrb[0].mxu0 %v833
        %v872 = vpop.f32.mrb[0].mxu0
        %v873 = vadd.f32 0.0, %v872
        %v874 = vpop.f32.mrb[0].mxu0
        %v875 = vpop.f32.mrb[0].mxu0
        %v876 = vpop.f32.mrb[0].mxu0
        %877 = vdwg.mxu0
        %v879 = vsel %vm736, %v783, 0
        %v882 = vsel %vm788, %v533, 0
        %884 = vmatprep.subr.bf16.mxu0 0
        %885 = vmatpush1.bf16.msra.mxu0 %v882
        %886 = vmatprep.subr.bf16.mxu0 0
        %887 = vmatpush1.bf16.msra.mxu0 0
        %888 = vmatprep.subr.bf16.mxu0 0
        %889 = vmatpush1.bf16.msra.mxu0 0
        %890 = vmatprep.subr.bf16.mxu0 0
        %891 = vmatpush1.bf16.msra.mxu0 0
        %892 = vmatprep.subr.bf16.mxu0 0
        %893 = vmatpush1.bf16.msra.mxu0 0
        %894 = vmatprep.subr.bf16.mxu0 0
        %895 = vmatpush1.bf16.msra.mxu0 0
        %896 = vmatprep.subr.bf16.mxu0 0
        %897 = vmatpush1.bf16.msra.mxu0 0
        %898 = vmatprep.subr.bf16.mxu0 0
        %899 = vmatpush1.bf16.msra.mxu0 0
        %900 = vmatprep.subr.bf16.mxu0 0
        %901 = vmatpush1.bf16.msra.mxu0 0
        %902 = vmatprep.subr.bf16.mxu0 0
        %903 = vmatpush1.bf16.msra.mxu0 0
        %904 = vmatprep.subr.bf16.mxu0 0
        %905 = vmatpush1.bf16.msra.mxu0 0
        %906 = vmatprep.subr.bf16.mxu0 0
        %907 = vmatpush1.bf16.msra.mxu0 0
        %908 = vmatprep.subr.bf16.mxu0 0
        %909 = vmatpush1.bf16.msra.mxu0 0
        %910 = vmatprep.subr.bf16.mxu0 0
        %911 = vmatpush1.bf16.msra.mxu0 0
        %912 = vmatprep.subr.bf16.mxu0 0
        %913 = vmatpush1.bf16.msra.mxu0 0
        %914 = vmatprep.subr.bf16.mxu0 0
        %915 = vmatpush1.bf16.msra.mxu0 0
        %916 = vmatprep.mubr.bf16.mxu0 0
        %917 = vmatmul.mubr.bf16.gmra.mrb[0].mxu0 %v879
        %v918 = vpop.f32.mrb[0].mxu0
        %v919 = vadd.f32 0.0, %v918
        %v920 = vpop.f32.mrb[0].mxu0
        %v921 = vpop.f32.mrb[0].mxu0
        %v922 = vpop.f32.mrb[0].mxu0
        %923 = vdwg.mxu0
        %v925 = vsel %vm736, %v784, 0
        %v928 = vsel %vm788, %v534, 0
        %930 = vmatprep.subr.bf16.mxu0 0
        %931 = vmatpush1.bf16.msra.mxu0 %v928
        %932 = vmatprep.subr.bf16.mxu0 0
        %933 = vmatpush1.bf16.msra.mxu0 0
        %934 = vmatprep.subr.bf16.mxu0 0
        %935 = vmatpush1.bf16.msra.mxu0 0
        %936 = vmatprep.subr.bf16.mxu0 0
        %937 = vmatpush1.bf16.msra.mxu0 0
        %938 = vmatprep.subr.bf16.mxu0 0
        %939 = vmatpush1.bf16.msra.mxu0 0
        %940 = vmatprep.subr.bf16.mxu0 0
        %941 = vmatpush1.bf16.msra.mxu0 0
        %942 = vmatprep.subr.bf16.mxu0 0
        %943 = vmatpush1.bf16.msra.mxu0 0
        %944 = vmatprep.subr.bf16.mxu0 0
        %945 = vmatpush1.bf16.msra.mxu0 0
        %946 = vmatprep.subr.bf16.mxu0 0
        %947 = vmatpush1.bf16.msra.mxu0 0
        %948 = vmatprep.subr.bf16.mxu0 0
        %949 = vmatpush1.bf16.msra.mxu0 0
        %950 = vmatprep.subr.bf16.mxu0 0
        %951 = vmatpush1.bf16.msra.mxu0 0
        %952 = vmatprep.subr.bf16.mxu0 0
        %953 = vmatpush1.bf16.msra.mxu0 0
        %954 = vmatprep.subr.bf16.mxu0 0
        %955 = vmatpush1.bf16.msra.mxu0 0
        %956 = vmatprep.subr.bf16.mxu0 0
        %957 = vmatpush1.bf16.msra.mxu0 0
        %958 = vmatprep.subr.bf16.mxu0 0
        %959 = vmatpush1.bf16.msra.mxu0 0
        %960 = vmatprep.subr.bf16.mxu0 0
        %961 = vmatpush1.bf16.msra.mxu0 0
        %962 = vmatprep.mubr.bf16.mxu0 0
        %963 = vmatmul.mubr.bf16.gmra.mrb[0].mxu0 %v925
        %v964 = vpop.f32.mrb[0].mxu0
        %v965 = vadd.f32 0.0, %v964
        %v966 = vpop.f32.mrb[0].mxu0
        %v967 = vpop.f32.mrb[0].mxu0
        %v968 = vpop.f32.mrb[0].mxu0
        %969 = vdwg.mxu0
        %971 = vrot.lane.b32.xlu0 %v523, 112
        %v972 = vpop.permute.xlu0 %971
        %973 = vrot.lane.b32.xlu0 %v527, 48
        %v974 = vpop.permute.xlu0 %973
        %v976 = vsel %vm538, %v972, 0
        %v979 = vsel %vm538, %v974, 0
        %981 = vmatprep.subr.bf16.mxu0 0
        %982 = vmatpush1.bf16.xpose.msra.mxu0 %v979
        %983 = vmatprep.subr.bf16.mxu0 0
        %984 = vmatpush1.bf16.xpose.msra.mxu0 0
        %985 = vmatprep.subr.bf16.mxu0 0
        %986 = vmatpush1.bf16.xpose.msra.mxu0 0
        %987 = vmatprep.subr.bf16.mxu0 0
        %988 = vmatpush1.bf16.xpose.msra.mxu0 0
        %989 = vmatprep.subr.bf16.mxu0 0
        %990 = vmatpush1.bf16.xpose.msra.mxu0 0
        %991 = vmatprep.subr.bf16.mxu0 0
        %992 = vmatpush1.bf16.xpose.msra.mxu0 0
        %993 = vmatprep.subr.bf16.mxu0 0
        %994 = vmatpush1.bf16.xpose.msra.mxu0 0
        %995 = vmatprep.subr.bf16.mxu0 0
        %996 = vmatpush1.bf16.xpose.msra.mxu0 0
        %997 = vmatprep.subr.bf16.mxu0 0
        %998 = vmatpush1.bf16.xpose.msra.mxu0 0
        %999 = vmatprep.subr.bf16.mxu0 0
        %1000 = vmatpush1.bf16.xpose.msra.mxu0 0
        %1001 = vmatprep.subr.bf16.mxu0 0
        %1002 = vmatpush1.bf16.xpose.msra.mxu0 0
        %1003 = vmatprep.subr.bf16.mxu0 0
        %1004 = vmatpush1.bf16.xpose.msra.mxu0 0
        %1005 = vmatprep.subr.bf16.mxu0 0
        %1006 = vmatpush1.bf16.xpose.msra.mxu0 0
        %1007 = vmatprep.subr.bf16.mxu0 0
        %1008 = vmatpush1.bf16.xpose.msra.mxu0 0
        %1009 = vmatprep.subr.bf16.mxu0 0
        %1010 = vmatpush1.bf16.xpose.msra.mxu0 0
        %1011 = vmatprep.subr.bf16.mxu0 0
        %1012 = vmatpush1.bf16.xpose.msra.mxu0 0
        %1013 = vmatprep.mubr.bf16.mxu0 0
        %1014 = vmatmul.mubr.bf16.gmra.mrb[0].mxu0 %v976
        %v1015 = vpop.f32.mrb[0].mxu0
        %v1016 = vadd.f32 0.0, %v1015
        %v1017 = vpop.f32.mrb[0].mxu0
        %v1018 = vpop.f32.mrb[0].mxu0
        %v1019 = vpop.f32.mrb[0].mxu0
        %1020 = vdwg.mxu0
        %1022 = vrot.lane.b32.xlu0 %v524, 112
        %v1023 = vpop.permute.xlu0 %1022
        %1024 = vrot.lane.b32.xlu0 %v528, 48
        %v1025 = vpop.permute.xlu0 %1024
        %v1027 = vsel %vm538, %v1023, 0
        %v1030 = vsel %vm538, %v1025, 0
        %1032 = vmatprep.subr.bf16.mxu0 0
        %1033 = vmatpush1.bf16.xpose.msra.mxu0 %v1030
        %1034 = vmatprep.subr.bf16.mxu0 0
        %1035 = vmatpush1.bf16.xpose.msra.mxu0 0
        %1036 = vmatprep.subr.bf16.mxu0 0
        %1037 = vmatpush1.bf16.xpose.msra.mxu0 0
        %1038 = vmatprep.subr.bf16.mxu0 0
        %1039 = vmatpush1.bf16.xpose.msra.mxu0 0
        %1040 = vmatprep.subr.bf16.mxu0 0
        %1041 = vmatpush1.bf16.xpose.msra.mxu0 0
        %1042 = vmatprep.subr.bf16.mxu0 0
        %1043 = vmatpush1.bf16.xpose.msra.mxu0 0
        %1044 = vmatprep.subr.bf16.mxu0 0
        %1045 = vmatpush1.bf16.xpose.msra.mxu0 0
        %1046 = vmatprep.subr.bf16.mxu0 0
        %1047 = vmatpush1.bf16.xpose.msra.mxu0 0
        %1048 = vmatprep.subr.bf16.mxu0 0
        %1049 = vmatpush1.bf16.xpose.msra.mxu0 0
        %1050 = vmatprep.subr.bf16.mxu0 0
        %1051 = vmatpush1.bf16.xpose.msra.mxu0 0
        %1052 = vmatprep.subr.bf16.mxu0 0
        %1053 = vmatpush1.bf16.xpose.msra.mxu0 0
        %1054 = vmatprep.subr.bf16.mxu0 0
        %1055 = vmatpush1.bf16.xpose.msra.mxu0 0
        %1056 = vmatprep.subr.bf16.mxu0 0
        %1057 = vmatpush1.bf16.xpose.msra.mxu0 0
        %1058 = vmatprep.subr.bf16.mxu0 0
        %1059 = vmatpush1.bf16.xpose.msra.mxu0 0
        %1060 = vmatprep.subr.bf16.mxu0 0
        %1061 = vmatpush1.bf16.xpose.msra.mxu0 0
        %1062 = vmatprep.subr.bf16.mxu0 0
        %1063 = vmatpush1.bf16.xpose.msra.mxu0 0
        %1064 = vmatprep.mubr.bf16.mxu0 0
        %1065 = vmatmul.mubr.bf16.gmra.mrb[0].mxu0 %v1027
        %v1066 = vpop.f32.mrb[0].mxu0
        %v1067 = vadd.f32 0.0, %v1066
        %v1068 = vpop.f32.mrb[0].mxu0
        %v1069 = vpop.f32.mrb[0].mxu0
        %v1070 = vpop.f32.mrb[0].mxu0
        %1071 = vdwg.mxu0
        %1073 = vrot.lane.b32.xlu0 %v525, 112
        %v1074 = vpop.permute.xlu0 %1073
        %1075 = vrot.lane.b32.xlu0 %v529, 48
        %v1076 = vpop.permute.xlu0 %1075
        %v1078 = vsel %vm538, %v1074, 0
        %v1081 = vsel %vm538, %v1076, 0
        %1083 = vmatprep.subr.bf16.mxu0 0
        %1084 = vmatpush1.bf16.xpose.msra.mxu0 %v1081
        %1085 = vmatprep.subr.bf16.mxu0 0
        %1086 = vmatpush1.bf16.xpose.msra.mxu0 0
        %1087 = vmatprep.subr.bf16.mxu0 0
        %1088 = vmatpush1.bf16.xpose.msra.mxu0 0
        %1089 = vmatprep.subr.bf16.mxu0 0
        %1090 = vmatpush1.bf16.xpose.msra.mxu0 0
        %1091 = vmatprep.subr.bf16.mxu0 0
        %1092 = vmatpush1.bf16.xpose.msra.mxu0 0
        %1093 = vmatprep.subr.bf16.mxu0 0
        %1094 = vmatpush1.bf16.xpose.msra.mxu0 0
        %1095 = vmatprep.subr.bf16.mxu0 0
        %1096 = vmatpush1.bf16.xpose.msra.mxu0 0
        %1097 = vmatprep.subr.bf16.mxu0 0
        %1098 = vmatpush1.bf16.xpose.msra.mxu0 0
        %1099 = vmatprep.subr.bf16.mxu0 0
        %1100 = vmatpush1.bf16.xpose.msra.mxu0 0
        %1101 = vmatprep.subr.bf16.mxu0 0
        %1102 = vmatpush1.bf16.xpose.msra.mxu0 0
        %1103 = vmatprep.subr.bf16.mxu0 0
        %1104 = vmatpush1.bf16.xpose.msra.mxu0 0
        %1105 = vmatprep.subr.bf16.mxu0 0
        %1106 = vmatpush1.bf16.xpose.msra.mxu0 0
        %1107 = vmatprep.subr.bf16.mxu0 0
        %1108 = vmatpush1.bf16.xpose.msra.mxu0 0
        %1109 = vmatprep.subr.bf16.mxu0 0
        %1110 = vmatpush1.bf16.xpose.msra.mxu0 0
        %1111 = vmatprep.subr.bf16.mxu0 0
        %1112 = vmatpush1.bf16.xpose.msra.mxu0 0
        %1113 = vmatprep.subr.bf16.mxu0 0
        %1114 = vmatpush1.bf16.xpose.msra.mxu0 0
        %1115 = vmatprep.mubr.bf16.mxu0 0
        %1116 = vmatmul.mubr.bf16.gmra.mrb[0].mxu0 %v1078
        %v1117 = vpop.f32.mrb[0].mxu0
        %v1118 = vadd.f32 0.0, %v1117
        %v1119 = vpop.f32.mrb[0].mxu0
        %v1120 = vpop.f32.mrb[0].mxu0
        %v1121 = vpop.f32.mrb[0].mxu0
        %1122 = vdwg.mxu0
        %1124 = vrot.lane.b32.xlu0 %v526, 112
        %v1125 = vpop.permute.xlu0 %1124
        %1126 = vrot.lane.b32.xlu0 %v530, 48
        %v1127 = vpop.permute.xlu0 %1126
        %v1129 = vsel %vm538, %v1125, 0
        %v1132 = vsel %vm538, %v1127, 0
        %1134 = vmatprep.subr.bf16.mxu0 0
        %1135 = vmatpush1.bf16.xpose.msra.mxu0 %v1132
        %1136 = vmatprep.subr.bf16.mxu0 0
        %1137 = vmatpush1.bf16.xpose.msra.mxu0 0
        %1138 = vmatprep.subr.bf16.mxu0 0
        %1139 = vmatpush1.bf16.xpose.msra.mxu0 0
        %1140 = vmatprep.subr.bf16.mxu0 0
        %1141 = vmatpush1.bf16.xpose.msra.mxu0 0
        %1142 = vmatprep.subr.bf16.mxu0 0
        %1143 = vmatpush1.bf16.xpose.msra.mxu0 0
        %1144 = vmatprep.subr.bf16.mxu0 0
        %1145 = vmatpush1.bf16.xpose.msra.mxu0 0
        %1146 = vmatprep.subr.bf16.mxu0 0
        %1147 = vmatpush1.bf16.xpose.msra.mxu0 0
        %1148 = vmatprep.subr.bf16.mxu0 0
        %1149 = vmatpush1.bf16.xpose.msra.mxu0 0
        %1150 = vmatprep.subr.bf16.mxu0 0
        %1151 = vmatpush1.bf16.xpose.msra.mxu0 0
        %1152 = vmatprep.subr.bf16.mxu0 0
        %1153 = vmatpush1.bf16.xpose.msra.mxu0 0
        %1154 = vmatprep.subr.bf16.mxu0 0
        %1155 = vmatpush1.bf16.xpose.msra.mxu0 0
        %1156 = vmatprep.subr.bf16.mxu0 0
        %1157 = vmatpush1.bf16.xpose.msra.mxu0 0
        %1158 = vmatprep.subr.bf16.mxu0 0
        %1159 = vmatpush1.bf16.xpose.msra.mxu0 0
        %1160 = vmatprep.subr.bf16.mxu0 0
        %1161 = vmatpush1.bf16.xpose.msra.mxu0 0
        %1162 = vmatprep.subr.bf16.mxu0 0
        %1163 = vmatpush1.bf16.xpose.msra.mxu0 0
        %1164 = vmatprep.subr.bf16.mxu0 0
        %1165 = vmatpush1.bf16.xpose.msra.mxu0 0
        %1166 = vmatprep.mubr.bf16.mxu0 0
        %1167 = vmatmul.mubr.bf16.gmra.mrb[0].mxu0 %v1129
        %v1168 = vpop.f32.mrb[0].mxu0
        %v1169 = vadd.f32 0.0, %v1168
        %v1170 = vpop.f32.mrb[0].mxu0
        %v1171 = vpop.f32.mrb[0].mxu0
        %v1172 = vpop.f32.mrb[0].mxu0
        %1173 = vdwg.mxu0
        %v1174 = vmul.f32 %v1016, 0.25
        %v1175 = vmul.f32 %v1067, 0.25
        %v1176 = vmul.f32 %v1118, 0.25
        %v1177 = vmul.f32 %v1169, 0.25
        %v1178 = vsel %vm736, %v1174, -inf
        %1179 = vmax.xlane.f32.xlu0 %v1178
        %v1180 = vpop.xlane.xlu0 %1179
        %v1181 = vsel %vm736, %v1175, -inf
        %1182 = vmax.xlane.f32.xlu0 %v1181
        %v1183 = vpop.xlane.xlu0 %1182
        %v1184 = vsel %vm736, %v1176, -inf
        %1185 = vmax.xlane.f32.xlu0 %v1184
        %v1186 = vpop.xlane.xlu0 %1185
        %v1187 = vsel %vm736, %v1177, -inf
        %1188 = vmax.xlane.f32.xlu0 %v1187
        %v1189 = vpop.xlane.xlu0 %1188
        %v1190 = vsub.f32 %v1174, %v1180
        %v1191 = vsub.f32 %v1175, %v1183
        %v1192 = vsub.f32 %v1176, %v1186
        %v1193 = vsub.f32 %v1177, %v1189
        %v1194 = vmul.f32 %v1190, 1.442695
        %v1195 = vpow.pop %v1194
        %v1196 = vmul.f32 %v1191, 1.442695
        %v1197 = vpow.pop %v1196
        %v1198 = vmul.f32 %v1192, 1.442695
        %v1199 = vpow.pop %v1198
        %v1200 = vmul.f32 %v1193, 1.442695
        %v1201 = vpow.pop %v1200
        %v1202 = vsel %vm736, %v1195, 0.0
        %1203 = vadd.xlane.f32.xlu0 %v1202
        %v1204 = vpop.xlane.xlu0 %1203
        %v1205 = vsel %vm736, %v1197, 0.0
        %1206 = vadd.xlane.f32.xlu0 %v1205
        %v1207 = vpop.xlane.xlu0 %1206
        %v1208 = vsel %vm736, %v1199, 0.0
        %1209 = vadd.xlane.f32.xlu0 %v1208
        %v1210 = vpop.xlane.xlu0 %1209
        %v1211 = vsel %vm736, %v1201, 0.0
        %1212 = vadd.xlane.f32.xlu0 %v1211
        %v1213 = vpop.xlane.xlu0 %1212
        %v1214 = vrcp.pop %v1204
        %v1215 = vrcp.pop %v1207
        %v1216 = vrcp.pop %v1210
        %v1217 = vrcp.pop %v1213
        %v1218 = vmul.f32 %v1195, %v1214
        %v1219 = vmul.f32 %v1197, %v1215
        %v1220 = vmul.f32 %v1199, %v1216
        %v1221 = vmul.f32 %v1201, %v1217
        %v1222 = vpack.c.bf16 %v1218, %v1218
        %v1223 = vpack.c.bf16 %v1219, %v1219
        %v1224 = vpack.c.bf16 %v1220, %v1220
        %v1225 = vpack.c.bf16 %v1221, %v1221
        %1227 = vrot.lane.b32.xlu0 %v531, 112
        %v1228 = vpop.permute.xlu0 %1227
        %v1230 = vsel %vm736, %v1222, 0
        %v1233 = vsel %vm788, %v1228, 0
        %1235 = vmatprep.subr.bf16.mxu0 0
        %1236 = vmatpush1.bf16.msra.mxu0 %v1233
        %1237 = vmatprep.subr.bf16.mxu0 0
        %1238 = vmatpush1.bf16.msra.mxu0 0
        %1239 = vmatprep.subr.bf16.mxu0 0
        %1240 = vmatpush1.bf16.msra.mxu0 0
        %1241 = vmatprep.subr.bf16.mxu0 0
        %1242 = vmatpush1.bf16.msra.mxu0 0
        %1243 = vmatprep.subr.bf16.mxu0 0
        %1244 = vmatpush1.bf16.msra.mxu0 0
        %1245 = vmatprep.subr.bf16.mxu0 0
        %1246 = vmatpush1.bf16.msra.mxu0 0
        %1247 = vmatprep.subr.bf16.mxu0 0
        %1248 = vmatpush1.bf16.msra.mxu0 0
        %1249 = vmatprep.subr.bf16.mxu0 0
        %1250 = vmatpush1.bf16.msra.mxu0 0
        %1251 = vmatprep.subr.bf16.mxu0 0
        %1252 = vmatpush1.bf16.msra.mxu0 0
        %1253 = vmatprep.subr.bf16.mxu0 0
        %1254 = vmatpush1.bf16.msra.mxu0 0
        %1255 = vmatprep.subr.bf16.mxu0 0
        %1256 = vmatpush1.bf16.msra.mxu0 0
        %1257 = vmatprep.subr.bf16.mxu0 0
        %1258 = vmatpush1.bf16.msra.mxu0 0
        %1259 = vmatprep.subr.bf16.mxu0 0
        %1260 = vmatpush1.bf16.msra.mxu0 0
        %1261 = vmatprep.subr.bf16.mxu0 0
        %1262 = vmatpush1.bf16.msra.mxu0 0
        %1263 = vmatprep.subr.bf16.mxu0 0
        %1264 = vmatpush1.bf16.msra.mxu0 0
        %1265 = vmatprep.subr.bf16.mxu0 0
        %1266 = vmatpush1.bf16.msra.mxu0 0
        %1267 = vmatprep.mubr.bf16.mxu0 0
        %1268 = vmatmul.mubr.bf16.gmra.mrb[0].mxu0 %v1230
        %v1269 = vpop.f32.mrb[0].mxu0
        %v1270 = vadd.f32 0.0, %v1269
        %v1271 = vpop.f32.mrb[0].mxu0
        %v1272 = vpop.f32.mrb[0].mxu0
        %v1273 = vpop.f32.mrb[0].mxu0
        %1274 = vdwg.mxu0
        %1276 = vrot.lane.b32.xlu0 %v532, 112
        %v1277 = vpop.permute.xlu0 %1276
        %v1279 = vsel %vm736, %v1223, 0
        %v1282 = vsel %vm788, %v1277, 0
        %1284 = vmatprep.subr.bf16.mxu0 0
        %1285 = vmatpush1.bf16.msra.mxu0 %v1282
        %1286 = vmatprep.subr.bf16.mxu0 0
        %1287 = vmatpush1.bf16.msra.mxu0 0
        %1288 = vmatprep.subr.bf16.mxu0 0
        %1289 = vmatpush1.bf16.msra.mxu0 0
        %1290 = vmatprep.subr.bf16.mxu0 0
        %1291 = vmatpush1.bf16.msra.mxu0 0
        %1292 = vmatprep.subr.bf16.mxu0 0
        %1293 = vmatpush1.bf16.msra.mxu0 0
        %1294 = vmatprep.subr.bf16.mxu0 0
        %1295 = vmatpush1.bf16.msra.mxu0 0
        %1296 = vmatprep.subr.bf16.mxu0 0
        %1297 = vmatpush1.bf16.msra.mxu0 0
        %1298 = vmatprep.subr.bf16.mxu0 0
        %1299 = vmatpush1.bf16.msra.mxu0 0
        %1300 = vmatprep.subr.bf16.mxu0 0
        %1301 = vmatpush1.bf16.msra.mxu0 0
        %1302 = vmatprep.subr.bf16.mxu0 0
        %1303 = vmatpush1.bf16.msra.mxu0 0
        %1304 = vmatprep.subr.bf16.mxu0 0
        %1305 = vmatpush1.bf16.msra.mxu0 0
        %1306 = vmatprep.subr.bf16.mxu0 0
        %1307 = vmatpush1.bf16.msra.mxu0 0
        %1308 = vmatprep.subr.bf16.mxu0 0
        %1309 = vmatpush1.bf16.msra.mxu0 0
        %1310 = vmatprep.subr.bf16.mxu0 0
        %1311 = vmatpush1.bf16.msra.mxu0 0
        %1312 = vmatprep.subr.bf16.mxu0 0
        %1313 = vmatpush1.bf16.msra.mxu0 0
        %1314 = vmatprep.subr.bf16.mxu0 0
        %1315 = vmatpush1.bf16.msra.mxu0 0
        %1316 = vmatprep.mubr.bf16.mxu0 0
        %1317 = vmatmul.mubr.bf16.gmra.mrb[0].mxu0 %v1279
        %v1318 = vpop.f32.mrb[0].mxu0
        %v1319 = vadd.f32 0.0, %v1318
        %v1320 = vpop.f32.mrb[0].mxu0
        %v1321 = vpop.f32.mrb[0].mxu0
        %v1322 = vpop.f32.mrb[0].mxu0
        %1323 = vdwg.mxu0
        %1325 = vrot.lane.b32.xlu0 %v533, 112
        %v1326 = vpop.permute.xlu0 %1325
        %v1328 = vsel %vm736, %v1224, 0
        %v1331 = vsel %vm788, %v1326, 0
        %1333 = vmatprep.subr.bf16.mxu0 0
        %1334 = vmatpush1.bf16.msra.mxu0 %v1331
        %1335 = vmatprep.subr.bf16.mxu0 0
        %1336 = vmatpush1.bf16.msra.mxu0 0
        %1337 = vmatprep.subr.bf16.mxu0 0
        %1338 = vmatpush1.bf16.msra.mxu0 0
        %1339 = vmatprep.subr.bf16.mxu0 0
        %1340 = vmatpush1.bf16.msra.mxu0 0
        %1341 = vmatprep.subr.bf16.mxu0 0
        %1342 = vmatpush1.bf16.msra.mxu0 0
        %1343 = vmatprep.subr.bf16.mxu0 0
        %1344 = vmatpush1.bf16.msra.mxu0 0
        %1345 = vmatprep.subr.bf16.mxu0 0
        %1346 = vmatpush1.bf16.msra.mxu0 0
        %1347 = vmatprep.subr.bf16.mxu0 0
        %1348 = vmatpush1.bf16.msra.mxu0 0
        %1349 = vmatprep.subr.bf16.mxu0 0
        %1350 = vmatpush1.bf16.msra.mxu0 0
        %1351 = vmatprep.subr.bf16.mxu0 0
        %1352 = vmatpush1.bf16.msra.mxu0 0
        %1353 = vmatprep.subr.bf16.mxu0 0
        %1354 = vmatpush1.bf16.msra.mxu0 0
        %1355 = vmatprep.subr.bf16.mxu0 0
        %1356 = vmatpush1.bf16.msra.mxu0 0
        %1357 = vmatprep.subr.bf16.mxu0 0
        %1358 = vmatpush1.bf16.msra.mxu0 0
        %1359 = vmatprep.subr.bf16.mxu0 0
        %1360 = vmatpush1.bf16.msra.mxu0 0
        %1361 = vmatprep.subr.bf16.mxu0 0
        %1362 = vmatpush1.bf16.msra.mxu0 0
        %1363 = vmatprep.subr.bf16.mxu0 0
        %1364 = vmatpush1.bf16.msra.mxu0 0
        %1365 = vmatprep.mubr.bf16.mxu0 0
        %1366 = vmatmul.mubr.bf16.gmra.mrb[0].mxu0 %v1328
        %v1367 = vpop.f32.mrb[0].mxu0
        %v1368 = vadd.f32 0.0, %v1367
        %v1369 = vpop.f32.mrb[0].mxu0
        %v1370 = vpop.f32.mrb[0].mxu0
        %v1371 = vpop.f32.mrb[0].mxu0
        %1372 = vdwg.mxu0
        %1374 = vrot.lane.b32.xlu0 %v534, 112
        %v1375 = vpop.permute.xlu0 %1374
        %v1377 = vsel %vm736, %v1225, 0
        %v1380 = vsel %vm788, %v1375, 0
        %1382 = vmatprep.subr.bf16.mxu0 0
        %1383 = vmatpush1.bf16.msra.mxu0 %v1380
        %1384 = vmatprep.subr.bf16.mxu0 0
        %1385 = vmatpush1.bf16.msra.mxu0 0
        %1386 = vmatprep.subr.bf16.mxu0 0
        %1387 = vmatpush1.bf16.msra.mxu0 0
        %1388 = vmatprep.subr.bf16.mxu0 0
        %1389 = vmatpush1.bf16.msra.mxu0 0
        %1390 = vmatprep.subr.bf16.mxu0 0
        %1391 = vmatpush1.bf16.msra.mxu0 0
        %1392 = vmatprep.subr.bf16.mxu0 0
        %1393 = vmatpush1.bf16.msra.mxu0 0
        %1394 = vmatprep.subr.bf16.mxu0 0
        %1395 = vmatpush1.bf16.msra.mxu0 0
        %1396 = vmatprep.subr.bf16.mxu0 0
        %1397 = vmatpush1.bf16.msra.mxu0 0
        %1398 = vmatprep.subr.bf16.mxu0 0
        %1399 = vmatpush1.bf16.msra.mxu0 0
        %1400 = vmatprep.subr.bf16.mxu0 0
        %1401 = vmatpush1.bf16.msra.mxu0 0
        %1402 = vmatprep.subr.bf16.mxu0 0
        %1403 = vmatpush1.bf16.msra.mxu0 0
        %1404 = vmatprep.subr.bf16.mxu0 0
        %1405 = vmatpush1.bf16.msra.mxu0 0
        %1406 = vmatprep.subr.bf16.mxu0 0
        %1407 = vmatpush1.bf16.msra.mxu0 0
        %1408 = vmatprep.subr.bf16.mxu0 0
        %1409 = vmatpush1.bf16.msra.mxu0 0
        %1410 = vmatprep.subr.bf16.mxu0 0
        %1411 = vmatpush1.bf16.msra.mxu0 0
        %1412 = vmatprep.subr.bf16.mxu0 0
        %1413 = vmatpush1.bf16.msra.mxu0 0
        %1414 = vmatprep.mubr.bf16.mxu0 0
        %1415 = vmatmul.mubr.bf16.gmra.mrb[0].mxu0 %v1377
        %v1416 = vpop.f32.mrb[0].mxu0
        %v1417 = vadd.f32 0.0, %v1416
        %v1418 = vpop.f32.mrb[0].mxu0
        %v1419 = vpop.f32.mrb[0].mxu0
        %v1420 = vpop.f32.mrb[0].mxu0
        %1421 = vdwg.mxu0
        %1422 = vrot.lane.b32.xlu0 %v523, 96
        %v1423 = vpop.permute.xlu0 %1422
        %1424 = vrot.lane.b32.xlu0 %v527, 32
        %v1425 = vpop.permute.xlu0 %1424
        %v1427 = vsel %vm538, %v1423, 0
        %v1430 = vsel %vm538, %v1425, 0
        %1432 = vmatprep.subr.bf16.mxu0 0
        %1433 = vmatpush1.bf16.xpose.msra.mxu0 %v1430
        %1434 = vmatprep.subr.bf16.mxu0 0
        %1435 = vmatpush1.bf16.xpose.msra.mxu0 0
        %1436 = vmatprep.subr.bf16.mxu0 0
        %1437 = vmatpush1.bf16.xpose.msra.mxu0 0
        %1438 = vmatprep.subr.bf16.mxu0 0
        %1439 = vmatpush1.bf16.xpose.msra.mxu0 0
        %1440 = vmatprep.subr.bf16.mxu0 0
        %1441 = vmatpush1.bf16.xpose.msra.mxu0 0
        %1442 = vmatprep.subr.bf16.mxu0 0
        %1443 = vmatpush1.bf16.xpose.msra.mxu0 0
        %1444 = vmatprep.subr.bf16.mxu0 0
        %1445 = vmatpush1.bf16.xpose.msra.mxu0 0
        %1446 = vmatprep.subr.bf16.mxu0 0
        %1447 = vmatpush1.bf16.xpose.msra.mxu0 0
        %1448 = vmatprep.subr.bf16.mxu0 0
        %1449 = vmatpush1.bf16.xpose.msra.mxu0 0
        %1450 = vmatprep.subr.bf16.mxu0 0
        %1451 = vmatpush1.bf16.xpose.msra.mxu0 0
        %1452 = vmatprep.subr.bf16.mxu0 0
        %1453 = vmatpush1.bf16.xpose.msra.mxu0 0
        %1454 = vmatprep.subr.bf16.mxu0 0
        %1455 = vmatpush1.bf16.xpose.msra.mxu0 0
        %1456 = vmatprep.subr.bf16.mxu0 0
        %1457 = vmatpush1.bf16.xpose.msra.mxu0 0
        %1458 = vmatprep.subr.bf16.mxu0 0
        %1459 = vmatpush1.bf16.xpose.msra.mxu0 0
        %1460 = vmatprep.subr.bf16.mxu0 0
        %1461 = vmatpush1.bf16.xpose.msra.mxu0 0
        %1462 = vmatprep.subr.bf16.mxu0 0
        %1463 = vmatpush1.bf16.xpose.msra.mxu0 0
        %1464 = vmatprep.mubr.bf16.mxu0 0
        %1465 = vmatmul.mubr.bf16.gmra.mrb[0].mxu0 %v1427
        %v1466 = vpop.f32.mrb[0].mxu0
        %v1467 = vadd.f32 0.0, %v1466
        %v1468 = vpop.f32.mrb[0].mxu0
        %v1469 = vpop.f32.mrb[0].mxu0
        %v1470 = vpop.f32.mrb[0].mxu0
        %1471 = vdwg.mxu0
        %1472 = vrot.lane.b32.xlu0 %v524, 96
        %v1473 = vpop.permute.xlu0 %1472
        %1474 = vrot.lane.b32.xlu0 %v528, 32
        %v1475 = vpop.permute.xlu0 %1474
        %v1477 = vsel %vm538, %v1473, 0
        %v1480 = vsel %vm538, %v1475, 0
        %1482 = vmatprep.subr.bf16.mxu0 0
        %1483 = vmatpush1.bf16.xpose.msra.mxu0 %v1480
        %1484 = vmatprep.subr.bf16.mxu0 0
        %1485 = vmatpush1.bf16.xpose.msra.mxu0 0
        %1486 = vmatprep.subr.bf16.mxu0 0
        %1487 = vmatpush1.bf16.xpose.msra.mxu0 0
        %1488 = vmatprep.subr.bf16.mxu0 0
        %1489 = vmatpush1.bf16.xpose.msra.mxu0 0
        %1490 = vmatprep.subr.bf16.mxu0 0
        %1491 = vmatpush1.bf16.xpose.msra.mxu0 0
        %1492 = vmatprep.subr.bf16.mxu0 0
        %1493 = vmatpush1.bf16.xpose.msra.mxu0 0
        %1494 = vmatprep.subr.bf16.mxu0 0
        %1495 = vmatpush1.bf16.xpose.msra.mxu0 0
        %1496 = vmatprep.subr.bf16.mxu0 0
        %1497 = vmatpush1.bf16.xpose.msra.mxu0 0
        %1498 = vmatprep.subr.bf16.mxu0 0
        %1499 = vmatpush1.bf16.xpose.msra.mxu0 0
        %1500 = vmatprep.subr.bf16.mxu0 0
        %1501 = vmatpush1.bf16.xpose.msra.mxu0 0
        %1502 = vmatprep.subr.bf16.mxu0 0
        %1503 = vmatpush1.bf16.xpose.msra.mxu0 0
        %1504 = vmatprep.subr.bf16.mxu0 0
        %1505 = vmatpush1.bf16.xpose.msra.mxu0 0
        %1506 = vmatprep.subr.bf16.mxu0 0
        %1507 = vmatpush1.bf16.xpose.msra.mxu0 0
        %1508 = vmatprep.subr.bf16.mxu0 0
        %1509 = vmatpush1.bf16.xpose.msra.mxu0 0
        %1510 = vmatprep.subr.bf16.mxu0 0
        %1511 = vmatpush1.bf16.xpose.msra.mxu0 0
        %1512 = vmatprep.subr.bf16.mxu0 0
        %1513 = vmatpush1.bf16.xpose.msra.mxu0 0
        %1514 = vmatprep.mubr.bf16.mxu0 0
        %1515 = vmatmul.mubr.bf16.gmra.mrb[0].mxu0 %v1477
        %v1516 = vpop.f32.mrb[0].mxu0
        %v1517 = vadd.f32 0.0, %v1516
        %v1518 = vpop.f32.mrb[0].mxu0
        %v1519 = vpop.f32.mrb[0].mxu0
        %v1520 = vpop.f32.mrb[0].mxu0
        %1521 = vdwg.mxu0
        %1522 = vrot.lane.b32.xlu0 %v525, 96
        %v1523 = vpop.permute.xlu0 %1522
        %1524 = vrot.lane.b32.xlu0 %v529, 32
        %v1525 = vpop.permute.xlu0 %1524
        %v1527 = vsel %vm538, %v1523, 0
        %v1530 = vsel %vm538, %v1525, 0
        %1532 = vmatprep.subr.bf16.mxu0 0
        %1533 = vmatpush1.bf16.xpose.msra.mxu0 %v1530
        %1534 = vmatprep.subr.bf16.mxu0 0
        %1535 = vmatpush1.bf16.xpose.msra.mxu0 0
        %1536 = vmatprep.subr.bf16.mxu0 0
        %1537 = vmatpush1.bf16.xpose.msra.mxu0 0
        %1538 = vmatprep.subr.bf16.mxu0 0
        %1539 = vmatpush1.bf16.xpose.msra.mxu0 0
        %1540 = vmatprep.subr.bf16.mxu0 0
        %1541 = vmatpush1.bf16.xpose.msra.mxu0 0
        %1542 = vmatprep.subr.bf16.mxu0 0
        %1543 = vmatpush1.bf16.xpose.msra.mxu0 0
        %1544 = vmatprep.subr.bf16.mxu0 0
        %1545 = vmatpush1.bf16.xpose.msra.mxu0 0
        %1546 = vmatprep.subr.bf16.mxu0 0
        %1547 = vmatpush1.bf16.xpose.msra.mxu0 0
        %1548 = vmatprep.subr.bf16.mxu0 0
        %1549 = vmatpush1.bf16.xpose.msra.mxu0 0
        %1550 = vmatprep.subr.bf16.mxu0 0
        %1551 = vmatpush1.bf16.xpose.msra.mxu0 0
        %1552 = vmatprep.subr.bf16.mxu0 0
        %1553 = vmatpush1.bf16.xpose.msra.mxu0 0
        %1554 = vmatprep.subr.bf16.mxu0 0
        %1555 = vmatpush1.bf16.xpose.msra.mxu0 0
        %1556 = vmatprep.subr.bf16.mxu0 0
        %1557 = vmatpush1.bf16.xpose.msra.mxu0 0
        %1558 = vmatprep.subr.bf16.mxu0 0
        %1559 = vmatpush1.bf16.xpose.msra.mxu0 0
        %1560 = vmatprep.subr.bf16.mxu0 0
        %1561 = vmatpush1.bf16.xpose.msra.mxu0 0
        %1562 = vmatprep.subr.bf16.mxu0 0
        %1563 = vmatpush1.bf16.xpose.msra.mxu0 0
        %1564 = vmatprep.mubr.bf16.mxu0 0
        %1565 = vmatmul.mubr.bf16.gmra.mrb[0].mxu0 %v1527
        %v1566 = vpop.f32.mrb[0].mxu0
        %v1567 = vadd.f32 0.0, %v1566
        %v1568 = vpop.f32.mrb[0].mxu0
        %v1569 = vpop.f32.mrb[0].mxu0
        %v1570 = vpop.f32.mrb[0].mxu0
        %1571 = vdwg.mxu0
        %1572 = vrot.lane.b32.xlu0 %v526, 96
        %v1573 = vpop.permute.xlu0 %1572
        %1574 = vrot.lane.b32.xlu0 %v530, 32
        %v1575 = vpop.permute.xlu0 %1574
        %v1577 = vsel %vm538, %v1573, 0
        %v1580 = vsel %vm538, %v1575, 0
        %1582 = vmatprep.subr.bf16.mxu0 0
        %1583 = vmatpush1.bf16.xpose.msra.mxu0 %v1580
        %1584 = vmatprep.subr.bf16.mxu0 0
        %1585 = vmatpush1.bf16.xpose.msra.mxu0 0
        %1586 = vmatprep.subr.bf16.mxu0 0
        %1587 = vmatpush1.bf16.xpose.msra.mxu0 0
        %1588 = vmatprep.subr.bf16.mxu0 0
        %1589 = vmatpush1.bf16.xpose.msra.mxu0 0
        %1590 = vmatprep.subr.bf16.mxu0 0
        %1591 = vmatpush1.bf16.xpose.msra.mxu0 0
        %1592 = vmatprep.subr.bf16.mxu0 0
        %1593 = vmatpush1.bf16.xpose.msra.mxu0 0
        %1594 = vmatprep.subr.bf16.mxu0 0
        %1595 = vmatpush1.bf16.xpose.msra.mxu0 0
        %1596 = vmatprep.subr.bf16.mxu0 0
        %1597 = vmatpush1.bf16.xpose.msra.mxu0 0
        %1598 = vmatprep.subr.bf16.mxu0 0
        %1599 = vmatpush1.bf16.xpose.msra.mxu0 0
        %1600 = vmatprep.subr.bf16.mxu0 0
        %1601 = vmatpush1.bf16.xpose.msra.mxu0 0
        %1602 = vmatprep.subr.bf16.mxu0 0
        %1603 = vmatpush1.bf16.xpose.msra.mxu0 0
        %1604 = vmatprep.subr.bf16.mxu0 0
        %1605 = vmatpush1.bf16.xpose.msra.mxu0 0
        %1606 = vmatprep.subr.bf16.mxu0 0
        %1607 = vmatpush1.bf16.xpose.msra.mxu0 0
        %1608 = vmatprep.subr.bf16.mxu0 0
        %1609 = vmatpush1.bf16.xpose.msra.mxu0 0
        %1610 = vmatprep.subr.bf16.mxu0 0
        %1611 = vmatpush1.bf16.xpose.msra.mxu0 0
        %1612 = vmatprep.subr.bf16.mxu0 0
        %1613 = vmatpush1.bf16.xpose.msra.mxu0 0
        %1614 = vmatprep.mubr.bf16.mxu0 0
        %1615 = vmatmul.mubr.bf16.gmra.mrb[0].mxu0 %v1577
        %v1616 = vpop.f32.mrb[0].mxu0
        %v1617 = vadd.f32 0.0, %v1616
        %v1618 = vpop.f32.mrb[0].mxu0
        %v1619 = vpop.f32.mrb[0].mxu0
        %v1620 = vpop.f32.mrb[0].mxu0
        %1621 = vdwg.mxu0
        %v1622 = vmul.f32 %v1467, 0.25
        %v1623 = vmul.f32 %v1517, 0.25
        %v1624 = vmul.f32 %v1567, 0.25
        %v1625 = vmul.f32 %v1617, 0.25
        %v1626 = vsel %vm736, %v1622, -inf
        %1627 = vmax.xlane.f32.xlu0 %v1626
        %v1628 = vpop.xlane.xlu0 %1627
        %v1629 = vsel %vm736, %v1623, -inf
        %1630 = vmax.xlane.f32.xlu0 %v1629
        %v1631 = vpop.xlane.xlu0 %1630
        %v1632 = vsel %vm736, %v1624, -inf
        %1633 = vmax.xlane.f32.xlu0 %v1632
        %v1634 = vpop.xlane.xlu0 %1633
        %v1635 = vsel %vm736, %v1625, -inf
        %1636 = vmax.xlane.f32.xlu0 %v1635
        %v1637 = vpop.xlane.xlu0 %1636
        %v1638 = vsub.f32 %v1622, %v1628
        %v1639 = vsub.f32 %v1623, %v1631
        %v1640 = vsub.f32 %v1624, %v1634
        %v1641 = vsub.f32 %v1625, %v1637
        %v1642 = vmul.f32 %v1638, 1.442695
        %v1643 = vpow.pop %v1642
        %v1644 = vmul.f32 %v1639, 1.442695
        %v1645 = vpow.pop %v1644
        %v1646 = vmul.f32 %v1640, 1.442695
        %v1647 = vpow.pop %v1646
        %v1648 = vmul.f32 %v1641, 1.442695
        %v1649 = vpow.pop %v1648
        %v1650 = vsel %vm736, %v1643, 0.0
        %1651 = vadd.xlane.f32.xlu0 %v1650
        %v1652 = vpop.xlane.xlu0 %1651
        %v1653 = vsel %vm736, %v1645, 0.0
        %1654 = vadd.xlane.f32.xlu0 %v1653
        %v1655 = vpop.xlane.xlu0 %1654
        %v1656 = vsel %vm736, %v1647, 0.0
        %1657 = vadd.xlane.f32.xlu0 %v1656
        %v1658 = vpop.xlane.xlu0 %1657
        %v1659 = vsel %vm736, %v1649, 0.0
        %1660 = vadd.xlane.f32.xlu0 %v1659
        %v1661 = vpop.xlane.xlu0 %1660
        %v1662 = vrcp.pop %v1652
        %v1663 = vrcp.pop %v1655
        %v1664 = vrcp.pop %v1658
        %v1665 = vrcp.pop %v1661
        %v1666 = vmul.f32 %v1643, %v1662
        %v1667 = vmul.f32 %v1645, %v1663
        %v1668 = vmul.f32 %v1647, %v1664
        %v1669 = vmul.f32 %v1649, %v1665
        %v1670 = vpack.c.bf16 %v1666, %v1666
        %v1671 = vpack.c.bf16 %v1667, %v1667
        %v1672 = vpack.c.bf16 %v1668, %v1668
        %v1673 = vpack.c.bf16 %v1669, %v1669
        %1674 = vrot.lane.b32.xlu0 %v531, 96
        %v1675 = vpop.permute.xlu0 %1674
        %v1677 = vsel %vm736, %v1670, 0
        %v1680 = vsel %vm788, %v1675, 0
        %1682 = vmatprep.subr.bf16.mxu0 0
        %1683 = vmatpush1.bf16.msra.mxu0 %v1680
        %1684 = vmatprep.subr.bf16.mxu0 0
        %1685 = vmatpush1.bf16.msra.mxu0 0
        %1686 = vmatprep.subr.bf16.mxu0 0
        %1687 = vmatpush1.bf16.msra.mxu0 0
        %1688 = vmatprep.subr.bf16.mxu0 0
        %1689 = vmatpush1.bf16.msra.mxu0 0
        %1690 = vmatprep.subr.bf16.mxu0 0
        %1691 = vmatpush1.bf16.msra.mxu0 0
        %1692 = vmatprep.subr.bf16.mxu0 0
        %1693 = vmatpush1.bf16.msra.mxu0 0
        %1694 = vmatprep.subr.bf16.mxu0 0
        %1695 = vmatpush1.bf16.msra.mxu0 0
        %1696 = vmatprep.subr.bf16.mxu0 0
        %1697 = vmatpush1.bf16.msra.mxu0 0
        %1698 = vmatprep.subr.bf16.mxu0 0
        %1699 = vmatpush1.bf16.msra.mxu0 0
        %1700 = vmatprep.subr.bf16.mxu0 0
        %1701 = vmatpush1.bf16.msra.mxu0 0
        %1702 = vmatprep.subr.bf16.mxu0 0
        %1703 = vmatpush1.bf16.msra.mxu0 0
        %1704 = vmatprep.subr.bf16.mxu0 0
        %1705 = vmatpush1.bf16.msra.mxu0 0
        %1706 = vmatprep.subr.bf16.mxu0 0
        %1707 = vmatpush1.bf16.msra.mxu0 0
        %1708 = vmatprep.subr.bf16.mxu0 0
        %1709 = vmatpush1.bf16.msra.mxu0 0
        %1710 = vmatprep.subr.bf16.mxu0 0
        %1711 = vmatpush1.bf16.msra.mxu0 0
        %1712 = vmatprep.subr.bf16.mxu0 0
        %1713 = vmatpush1.bf16.msra.mxu0 0
        %1714 = vmatprep.mubr.bf16.mxu0 0
        %1715 = vmatmul.mubr.bf16.gmra.mrb[0].mxu0 %v1677
        %v1716 = vpop.f32.mrb[0].mxu0
        %v1717 = vadd.f32 0.0, %v1716
        %v1718 = vpop.f32.mrb[0].mxu0
        %v1719 = vpop.f32.mrb[0].mxu0
        %v1720 = vpop.f32.mrb[0].mxu0
        %1721 = vdwg.mxu0
        %1722 = vrot.lane.b32.xlu0 %v532, 96
        %v1723 = vpop.permute.xlu0 %1722
        %v1725 = vsel %vm736, %v1671, 0
        %v1728 = vsel %vm788, %v1723, 0
        %1730 = vmatprep.subr.bf16.mxu0 0
        %1731 = vmatpush1.bf16.msra.mxu0 %v1728
        %1732 = vmatprep.subr.bf16.mxu0 0
        %1733 = vmatpush1.bf16.msra.mxu0 0
        %1734 = vmatprep.subr.bf16.mxu0 0
        %1735 = vmatpush1.bf16.msra.mxu0 0
        %1736 = vmatprep.subr.bf16.mxu0 0
        %1737 = vmatpush1.bf16.msra.mxu0 0
        %1738 = vmatprep.subr.bf16.mxu0 0
        %1739 = vmatpush1.bf16.msra.mxu0 0
        %1740 = vmatprep.subr.bf16.mxu0 0
        %1741 = vmatpush1.bf16.msra.mxu0 0
        %1742 = vmatprep.subr.bf16.mxu0 0
        %1743 = vmatpush1.bf16.msra.mxu0 0
        %1744 = vmatprep.subr.bf16.mxu0 0
        %1745 = vmatpush1.bf16.msra.mxu0 0
        %1746 = vmatprep.subr.bf16.mxu0 0
        %1747 = vmatpush1.bf16.msra.mxu0 0
        %1748 = vmatprep.subr.bf16.mxu0 0
        %1749 = vmatpush1.bf16.msra.mxu0 0
        %1750 = vmatprep.subr.bf16.mxu0 0
        %1751 = vmatpush1.bf16.msra.mxu0 0
        %1752 = vmatprep.subr.bf16.mxu0 0
        %1753 = vmatpush1.bf16.msra.mxu0 0
        %1754 = vmatprep.subr.bf16.mxu0 0
        %1755 = vmatpush1.bf16.msra.mxu0 0
        %1756 = vmatprep.subr.bf16.mxu0 0
        %1757 = vmatpush1.bf16.msra.mxu0 0
        %1758 = vmatprep.subr.bf16.mxu0 0
        %1759 = vmatpush1.bf16.msra.mxu0 0
        %1760 = vmatprep.subr.bf16.mxu0 0
        %1761 = vmatpush1.bf16.msra.mxu0 0
        %1762 = vmatprep.mubr.bf16.mxu0 0
        %1763 = vmatmul.mubr.bf16.gmra.mrb[0].mxu0 %v1725
        %v1764 = vpop.f32.mrb[0].mxu0
        %v1765 = vadd.f32 0.0, %v1764
        %v1766 = vpop.f32.mrb[0].mxu0
        %v1767 = vpop.f32.mrb[0].mxu0
        %v1768 = vpop.f32.mrb[0].mxu0
        %1769 = vdwg.mxu0
        %1770 = vrot.lane.b32.xlu0 %v533, 96
        %v1771 = vpop.permute.xlu0 %1770
        %v1773 = vsel %vm736, %v1672, 0
        %v1776 = vsel %vm788, %v1771, 0
        %1778 = vmatprep.subr.bf16.mxu0 0
        %1779 = vmatpush1.bf16.msra.mxu0 %v1776
        %1780 = vmatprep.subr.bf16.mxu0 0
        %1781 = vmatpush1.bf16.msra.mxu0 0
        %1782 = vmatprep.subr.bf16.mxu0 0
        %1783 = vmatpush1.bf16.msra.mxu0 0
        %1784 = vmatprep.subr.bf16.mxu0 0
        %1785 = vmatpush1.bf16.msra.mxu0 0
        %1786 = vmatprep.subr.bf16.mxu0 0
        %1787 = vmatpush1.bf16.msra.mxu0 0
        %1788 = vmatprep.subr.bf16.mxu0 0
        %1789 = vmatpush1.bf16.msra.mxu0 0
        %1790 = vmatprep.subr.bf16.mxu0 0
        %1791 = vmatpush1.bf16.msra.mxu0 0
        %1792 = vmatprep.subr.bf16.mxu0 0
        %1793 = vmatpush1.bf16.msra.mxu0 0
        %1794 = vmatprep.subr.bf16.mxu0 0
        %1795 = vmatpush1.bf16.msra.mxu0 0
        %1796 = vmatprep.subr.bf16.mxu0 0
        %1797 = vmatpush1.bf16.msra.mxu0 0
        %1798 = vmatprep.subr.bf16.mxu0 0
        %1799 = vmatpush1.bf16.msra.mxu0 0
        %1800 = vmatprep.subr.bf16.mxu0 0
        %1801 = vmatpush1.bf16.msra.mxu0 0
        %1802 = vmatprep.subr.bf16.mxu0 0
        %1803 = vmatpush1.bf16.msra.mxu0 0
        %1804 = vmatprep.subr.bf16.mxu0 0
        %1805 = vmatpush1.bf16.msra.mxu0 0
        %1806 = vmatprep.subr.bf16.mxu0 0
        %1807 = vmatpush1.bf16.msra.mxu0 0
        %1808 = vmatprep.subr.bf16.mxu0 0
        %1809 = vmatpush1.bf16.msra.mxu0 0
        %1810 = vmatprep.mubr.bf16.mxu0 0
        %1811 = vmatmul.mubr.bf16.gmra.mrb[0].mxu0 %v1773
        %v1812 = vpop.f32.mrb[0].mxu0
        %v1813 = vadd.f32 0.0, %v1812
        %v1814 = vpop.f32.mrb[0].mxu0
        %v1815 = vpop.f32.mrb[0].mxu0
        %v1816 = vpop.f32.mrb[0].mxu0
        %1817 = vdwg.mxu0
        %1818 = vrot.lane.b32.xlu0 %v534, 96
        %v1819 = vpop.permute.xlu0 %1818
        %v1821 = vsel %vm736, %v1673, 0
        %v1824 = vsel %vm788, %v1819, 0
        %1826 = vmatprep.subr.bf16.mxu0 0
        %1827 = vmatpush1.bf16.msra.mxu0 %v1824
        %1828 = vmatprep.subr.bf16.mxu0 0
        %1829 = vmatpush1.bf16.msra.mxu0 0
        %1830 = vmatprep.subr.bf16.mxu0 0
        %1831 = vmatpush1.bf16.msra.mxu0 0
        %1832 = vmatprep.subr.bf16.mxu0 0
        %1833 = vmatpush1.bf16.msra.mxu0 0
        %1834 = vmatprep.subr.bf16.mxu0 0
        %1835 = vmatpush1.bf16.msra.mxu0 0
        %1836 = vmatprep.subr.bf16.mxu0 0
        %1837 = vmatpush1.bf16.msra.mxu0 0
        %1838 = vmatprep.subr.bf16.mxu0 0
        %1839 = vmatpush1.bf16.msra.mxu0 0
        %1840 = vmatprep.subr.bf16.mxu0 0
        %1841 = vmatpush1.bf16.msra.mxu0 0
        %1842 = vmatprep.subr.bf16.mxu0 0
        %1843 = vmatpush1.bf16.msra.mxu0 0
        %1844 = vmatprep.subr.bf16.mxu0 0
        %1845 = vmatpush1.bf16.msra.mxu0 0
        %1846 = vmatprep.subr.bf16.mxu0 0
        %1847 = vmatpush1.bf16.msra.mxu0 0
        %1848 = vmatprep.subr.bf16.mxu0 0
        %1849 = vmatpush1.bf16.msra.mxu0 0
        %1850 = vmatprep.subr.bf16.mxu0 0
        %1851 = vmatpush1.bf16.msra.mxu0 0
        %1852 = vmatprep.subr.bf16.mxu0 0
        %1853 = vmatpush1.bf16.msra.mxu0 0
        %1854 = vmatprep.subr.bf16.mxu0 0
        %1855 = vmatpush1.bf16.msra.mxu0 0
        %1856 = vmatprep.subr.bf16.mxu0 0
        %1857 = vmatpush1.bf16.msra.mxu0 0
        %1858 = vmatprep.mubr.bf16.mxu0 0
        %1859 = vmatmul.mubr.bf16.gmra.mrb[0].mxu0 %v1821
        %v1860 = vpop.f32.mrb[0].mxu0
        %v1861 = vadd.f32 0.0, %v1860
        %v1862 = vpop.f32.mrb[0].mxu0
        %v1863 = vpop.f32.mrb[0].mxu0
        %v1864 = vpop.f32.mrb[0].mxu0
        %1865 = vdwg.mxu0
        %1866 = vrot.lane.b32.xlu0 %v523, 80
        %v1867 = vpop.permute.xlu0 %1866
        %1868 = vrot.lane.b32.xlu0 %v527, 16
        %v1869 = vpop.permute.xlu0 %1868
        %v1871 = vsel %vm538, %v1867, 0
        %v1874 = vsel %vm538, %v1869, 0
        %1876 = vmatprep.subr.bf16.mxu0 0
        %1877 = vmatpush1.bf16.xpose.msra.mxu0 %v1874
        %1878 = vmatprep.subr.bf16.mxu0 0
        %1879 = vmatpush1.bf16.xpose.msra.mxu0 0
        %1880 = vmatprep.subr.bf16.mxu0 0
        %1881 = vmatpush1.bf16.xpose.msra.mxu0 0
        %1882 = vmatprep.subr.bf16.mxu0 0
        %1883 = vmatpush1.bf16.xpose.msra.mxu0 0
        %1884 = vmatprep.subr.bf16.mxu0 0
        %1885 = vmatpush1.bf16.xpose.msra.mxu0 0
        %1886 = vmatprep.subr.bf16.mxu0 0
        %1887 = vmatpush1.bf16.xpose.msra.mxu0 0
        %1888 = vmatprep.subr.bf16.mxu0 0
        %1889 = vmatpush1.bf16.xpose.msra.mxu0 0
        %1890 = vmatprep.subr.bf16.mxu0 0
        %1891 = vmatpush1.bf16.xpose.msra.mxu0 0
        %1892 = vmatprep.subr.bf16.mxu0 0
        %1893 = vmatpush1.bf16.xpose.msra.mxu0 0
        %1894 = vmatprep.subr.bf16.mxu0 0
        %1895 = vmatpush1.bf16.xpose.msra.mxu0 0
        %1896 = vmatprep.subr.bf16.mxu0 0
        %1897 = vmatpush1.bf16.xpose.msra.mxu0 0
        %1898 = vmatprep.subr.bf16.mxu0 0
        %1899 = vmatpush1.bf16.xpose.msra.mxu0 0
        %1900 = vmatprep.subr.bf16.mxu0 0
        %1901 = vmatpush1.bf16.xpose.msra.mxu0 0
        %1902 = vmatprep.subr.bf16.mxu0 0
        %1903 = vmatpush1.bf16.xpose.msra.mxu0 0
        %1904 = vmatprep.subr.bf16.mxu0 0
        %1905 = vmatpush1.bf16.xpose.msra.mxu0 0
        %1906 = vmatprep.subr.bf16.mxu0 0
        %1907 = vmatpush1.bf16.xpose.msra.mxu0 0
        %1908 = vmatprep.mubr.bf16.mxu0 0
        %1909 = vmatmul.mubr.bf16.gmra.mrb[0].mxu0 %v1871
        %v1910 = vpop.f32.mrb[0].mxu0
        %v1911 = vadd.f32 0.0, %v1910
        %v1912 = vpop.f32.mrb[0].mxu0
        %v1913 = vpop.f32.mrb[0].mxu0
        %v1914 = vpop.f32.mrb[0].mxu0
        %1915 = vdwg.mxu0
        %1916 = vrot.lane.b32.xlu0 %v524, 80
        %v1917 = vpop.permute.xlu0 %1916
        %1918 = vrot.lane.b32.xlu0 %v528, 16
        %v1919 = vpop.permute.xlu0 %1918
        %v1921 = vsel %vm538, %v1917, 0
        %v1924 = vsel %vm538, %v1919, 0
        %1926 = vmatprep.subr.bf16.mxu0 0
        %1927 = vmatpush1.bf16.xpose.msra.mxu0 %v1924
        %1928 = vmatprep.subr.bf16.mxu0 0
        %1929 = vmatpush1.bf16.xpose.msra.mxu0 0
        %1930 = vmatprep.subr.bf16.mxu0 0
        %1931 = vmatpush1.bf16.xpose.msra.mxu0 0
        %1932 = vmatprep.subr.bf16.mxu0 0
        %1933 = vmatpush1.bf16.xpose.msra.mxu0 0
        %1934 = vmatprep.subr.bf16.mxu0 0
        %1935 = vmatpush1.bf16.xpose.msra.mxu0 0
        %1936 = vmatprep.subr.bf16.mxu0 0
        %1937 = vmatpush1.bf16.xpose.msra.mxu0 0
        %1938 = vmatprep.subr.bf16.mxu0 0
        %1939 = vmatpush1.bf16.xpose.msra.mxu0 0
        %1940 = vmatprep.subr.bf16.mxu0 0
        %1941 = vmatpush1.bf16.xpose.msra.mxu0 0
        %1942 = vmatprep.subr.bf16.mxu0 0
        %1943 = vmatpush1.bf16.xpose.msra.mxu0 0
        %1944 = vmatprep.subr.bf16.mxu0 0
        %1945 = vmatpush1.bf16.xpose.msra.mxu0 0
        %1946 = vmatprep.subr.bf16.mxu0 0
        %1947 = vmatpush1.bf16.xpose.msra.mxu0 0
        %1948 = vmatprep.subr.bf16.mxu0 0
        %1949 = vmatpush1.bf16.xpose.msra.mxu0 0
        %1950 = vmatprep.subr.bf16.mxu0 0
        %1951 = vmatpush1.bf16.xpose.msra.mxu0 0
        %1952 = vmatprep.subr.bf16.mxu0 0
        %1953 = vmatpush1.bf16.xpose.msra.mxu0 0
        %1954 = vmatprep.subr.bf16.mxu0 0
        %1955 = vmatpush1.bf16.xpose.msra.mxu0 0
        %1956 = vmatprep.subr.bf16.mxu0 0
        %1957 = vmatpush1.bf16.xpose.msra.mxu0 0
        %1958 = vmatprep.mubr.bf16.mxu0 0
        %1959 = vmatmul.mubr.bf16.gmra.mrb[0].mxu0 %v1921
        %v1960 = vpop.f32.mrb[0].mxu0
        %v1961 = vadd.f32 0.0, %v1960
        %v1962 = vpop.f32.mrb[0].mxu0
        %v1963 = vpop.f32.mrb[0].mxu0
        %v1964 = vpop.f32.mrb[0].mxu0
        %1965 = vdwg.mxu0
        %1966 = vrot.lane.b32.xlu0 %v525, 80
        %v1967 = vpop.permute.xlu0 %1966
        %1968 = vrot.lane.b32.xlu0 %v529, 16
        %v1969 = vpop.permute.xlu0 %1968
        %v1971 = vsel %vm538, %v1967, 0
        %v1974 = vsel %vm538, %v1969, 0
        %1976 = vmatprep.subr.bf16.mxu0 0
        %1977 = vmatpush1.bf16.xpose.msra.mxu0 %v1974
        %1978 = vmatprep.subr.bf16.mxu0 0
        %1979 = vmatpush1.bf16.xpose.msra.mxu0 0
        %1980 = vmatprep.subr.bf16.mxu0 0
        %1981 = vmatpush1.bf16.xpose.msra.mxu0 0
        %1982 = vmatprep.subr.bf16.mxu0 0
        %1983 = vmatpush1.bf16.xpose.msra.mxu0 0
        %1984 = vmatprep.subr.bf16.mxu0 0
        %1985 = vmatpush1.bf16.xpose.msra.mxu0 0
        %1986 = vmatprep.subr.bf16.mxu0 0
        %1987 = vmatpush1.bf16.xpose.msra.mxu0 0
        %1988 = vmatprep.subr.bf16.mxu0 0
        %1989 = vmatpush1.bf16.xpose.msra.mxu0 0
        %1990 = vmatprep.subr.bf16.mxu0 0
        %1991 = vmatpush1.bf16.xpose.msra.mxu0 0
        %1992 = vmatprep.subr.bf16.mxu0 0
        %1993 = vmatpush1.bf16.xpose.msra.mxu0 0
        %1994 = vmatprep.subr.bf16.mxu0 0
        %1995 = vmatpush1.bf16.xpose.msra.mxu0 0
        %1996 = vmatprep.subr.bf16.mxu0 0
        %1997 = vmatpush1.bf16.xpose.msra.mxu0 0
        %1998 = vmatprep.subr.bf16.mxu0 0
        %1999 = vmatpush1.bf16.xpose.msra.mxu0 0
        %2000 = vmatprep.subr.bf16.mxu0 0
        %2001 = vmatpush1.bf16.xpose.msra.mxu0 0
        %2002 = vmatprep.subr.bf16.mxu0 0
        %2003 = vmatpush1.bf16.xpose.msra.mxu0 0
        %2004 = vmatprep.subr.bf16.mxu0 0
        %2005 = vmatpush1.bf16.xpose.msra.mxu0 0
        %2006 = vmatprep.subr.bf16.mxu0 0
        %2007 = vmatpush1.bf16.xpose.msra.mxu0 0
        %2008 = vmatprep.mubr.bf16.mxu0 0
        %2009 = vmatmul.mubr.bf16.gmra.mrb[0].mxu0 %v1971
        %v2010 = vpop.f32.mrb[0].mxu0
        %v2011 = vadd.f32 0.0, %v2010
        %v2012 = vpop.f32.mrb[0].mxu0
        %v2013 = vpop.f32.mrb[0].mxu0
        %v2014 = vpop.f32.mrb[0].mxu0
        %2015 = vdwg.mxu0
        %2016 = vrot.lane.b32.xlu0 %v526, 80
        %v2017 = vpop.permute.xlu0 %2016
        %2018 = vrot.lane.b32.xlu0 %v530, 16
        %v2019 = vpop.permute.xlu0 %2018
        %v2021 = vsel %vm538, %v2017, 0
        %v2024 = vsel %vm538, %v2019, 0
        %2026 = vmatprep.subr.bf16.mxu0 0
        %2027 = vmatpush1.bf16.xpose.msra.mxu0 %v2024
        %2028 = vmatprep.subr.bf16.mxu0 0
        %2029 = vmatpush1.bf16.xpose.msra.mxu0 0
        %2030 = vmatprep.subr.bf16.mxu0 0
        %2031 = vmatpush1.bf16.xpose.msra.mxu0 0
        %2032 = vmatprep.subr.bf16.mxu0 0
        %2033 = vmatpush1.bf16.xpose.msra.mxu0 0
        %2034 = vmatprep.subr.bf16.mxu0 0
        %2035 = vmatpush1.bf16.xpose.msra.mxu0 0
        %2036 = vmatprep.subr.bf16.mxu0 0
        %2037 = vmatpush1.bf16.xpose.msra.mxu0 0
        %2038 = vmatprep.subr.bf16.mxu0 0
        %2039 = vmatpush1.bf16.xpose.msra.mxu0 0
        %2040 = vmatprep.subr.bf16.mxu0 0
        %2041 = vmatpush1.bf16.xpose.msra.mxu0 0
        %2042 = vmatprep.subr.bf16.mxu0 0
        %2043 = vmatpush1.bf16.xpose.msra.mxu0 0
        %2044 = vmatprep.subr.bf16.mxu0 0
        %2045 = vmatpush1.bf16.xpose.msra.mxu0 0
        %2046 = vmatprep.subr.bf16.mxu0 0
        %2047 = vmatpush1.bf16.xpose.msra.mxu0 0
        %2048 = vmatprep.subr.bf16.mxu0 0
        %2049 = vmatpush1.bf16.xpose.msra.mxu0 0
        %2050 = vmatprep.subr.bf16.mxu0 0
        %2051 = vmatpush1.bf16.xpose.msra.mxu0 0
        %2052 = vmatprep.subr.bf16.mxu0 0
        %2053 = vmatpush1.bf16.xpose.msra.mxu0 0
        %2054 = vmatprep.subr.bf16.mxu0 0
        %2055 = vmatpush1.bf16.xpose.msra.mxu0 0
        %2056 = vmatprep.subr.bf16.mxu0 0
        %2057 = vmatpush1.bf16.xpose.msra.mxu0 0
        %2058 = vmatprep.mubr.bf16.mxu0 0
        %2059 = vmatmul.mubr.bf16.gmra.mrb[0].mxu0 %v2021
        %v2060 = vpop.f32.mrb[0].mxu0
        %v2061 = vadd.f32 0.0, %v2060
        %v2062 = vpop.f32.mrb[0].mxu0
        %v2063 = vpop.f32.mrb[0].mxu0
        %v2064 = vpop.f32.mrb[0].mxu0
        %2065 = vdwg.mxu0
        %v2066 = vmul.f32 %v1911, 0.25
        %v2067 = vmul.f32 %v1961, 0.25
        %v2068 = vmul.f32 %v2011, 0.25
        %v2069 = vmul.f32 %v2061, 0.25
        %v2070 = vsel %vm736, %v2066, -inf
        %2071 = vmax.xlane.f32.xlu0 %v2070
        %v2072 = vpop.xlane.xlu0 %2071
        %v2073 = vsel %vm736, %v2067, -inf
        %2074 = vmax.xlane.f32.xlu0 %v2073
        %v2075 = vpop.xlane.xlu0 %2074
        %v2076 = vsel %vm736, %v2068, -inf
        %2077 = vmax.xlane.f32.xlu0 %v2076
        %v2078 = vpop.xlane.xlu0 %2077
        %v2079 = vsel %vm736, %v2069, -inf
        %2080 = vmax.xlane.f32.xlu0 %v2079
        %v2081 = vpop.xlane.xlu0 %2080
        %v2082 = vsub.f32 %v2066, %v2072
        %v2083 = vsub.f32 %v2067, %v2075
        %v2084 = vsub.f32 %v2068, %v2078
        %v2085 = vsub.f32 %v2069, %v2081
        %v2086 = vmul.f32 %v2082, 1.442695
        %v2087 = vpow.pop %v2086
        %v2088 = vmul.f32 %v2083, 1.442695
        %v2089 = vpow.pop %v2088
        %v2090 = vmul.f32 %v2084, 1.442695
        %v2091 = vpow.pop %v2090
        %v2092 = vmul.f32 %v2085, 1.442695
        %v2093 = vpow.pop %v2092
        %v2094 = vsel %vm736, %v2087, 0.0
        %2095 = vadd.xlane.f32.xlu0 %v2094
        %v2096 = vpop.xlane.xlu0 %2095
        %v2097 = vsel %vm736, %v2089, 0.0
        %2098 = vadd.xlane.f32.xlu0 %v2097
        %v2099 = vpop.xlane.xlu0 %2098
        %v2100 = vsel %vm736, %v2091, 0.0
        %2101 = vadd.xlane.f32.xlu0 %v2100
        %v2102 = vpop.xlane.xlu0 %2101
        %v2103 = vsel %vm736, %v2093, 0.0
        %2104 = vadd.xlane.f32.xlu0 %v2103
        %v2105 = vpop.xlane.xlu0 %2104
        %v2106 = vrcp.pop %v2096
        %v2107 = vrcp.pop %v2099
        %v2108 = vrcp.pop %v2102
        %v2109 = vrcp.pop %v2105
        %v2110 = vmul.f32 %v2087, %v2106
        %v2111 = vmul.f32 %v2089, %v2107
        %v2112 = vmul.f32 %v2091, %v2108
        %v2113 = vmul.f32 %v2093, %v2109
        %v2114 = vpack.c.bf16 %v2110, %v2110
        %v2115 = vpack.c.bf16 %v2111, %v2111
        %v2116 = vpack.c.bf16 %v2112, %v2112
        %v2117 = vpack.c.bf16 %v2113, %v2113
        %2118 = vrot.lane.b32.xlu0 %v531, 80
        %v2119 = vpop.permute.xlu0 %2118
        %v2121 = vsel %vm736, %v2114, 0
        %v2124 = vsel %vm788, %v2119, 0
        %2126 = vmatprep.subr.bf16.mxu0 0
        %2127 = vmatpush1.bf16.msra.mxu0 %v2124
        %2128 = vmatprep.subr.bf16.mxu0 0
        %2129 = vmatpush1.bf16.msra.mxu0 0
        %2130 = vmatprep.subr.bf16.mxu0 0
        %2131 = vmatpush1.bf16.msra.mxu0 0
        %2132 = vmatprep.subr.bf16.mxu0 0
        %2133 = vmatpush1.bf16.msra.mxu0 0
        %2134 = vmatprep.subr.bf16.mxu0 0
        %2135 = vmatpush1.bf16.msra.mxu0 0
        %2136 = vmatprep.subr.bf16.mxu0 0
        %2137 = vmatpush1.bf16.msra.mxu0 0
        %2138 = vmatprep.subr.bf16.mxu0 0
        %2139 = vmatpush1.bf16.msra.mxu0 0
        %2140 = vmatprep.subr.bf16.mxu0 0
        %2141 = vmatpush1.bf16.msra.mxu0 0
        %2142 = vmatprep.subr.bf16.mxu0 0
        %2143 = vmatpush1.bf16.msra.mxu0 0
        %2144 = vmatprep.subr.bf16.mxu0 0
        %2145 = vmatpush1.bf16.msra.mxu0 0
        %2146 = vmatprep.subr.bf16.mxu0 0
        %2147 = vmatpush1.bf16.msra.mxu0 0
        %2148 = vmatprep.subr.bf16.mxu0 0
        %2149 = vmatpush1.bf16.msra.mxu0 0
        %2150 = vmatprep.subr.bf16.mxu0 0
        %2151 = vmatpush1.bf16.msra.mxu0 0
        %2152 = vmatprep.subr.bf16.mxu0 0
        %2153 = vmatpush1.bf16.msra.mxu0 0
        %2154 = vmatprep.subr.bf16.mxu0 0
        %2155 = vmatpush1.bf16.msra.mxu0 0
        %2156 = vmatprep.subr.bf16.mxu0 0
        %2157 = vmatpush1.bf16.msra.mxu0 0
        %2158 = vmatprep.mubr.bf16.mxu0 0
        %2159 = vmatmul.mubr.bf16.gmra.mrb[0].mxu0 %v2121
        %v2160 = vpop.f32.mrb[0].mxu0
        %v2161 = vadd.f32 0.0, %v2160
        %v2162 = vpop.f32.mrb[0].mxu0
        %v2163 = vpop.f32.mrb[0].mxu0
        %v2164 = vpop.f32.mrb[0].mxu0
        %2165 = vdwg.mxu0
        %2166 = vrot.lane.b32.xlu0 %v532, 80
        %v2167 = vpop.permute.xlu0 %2166
        %v2169 = vsel %vm736, %v2115, 0
        %v2172 = vsel %vm788, %v2167, 0
        %2174 = vmatprep.subr.bf16.mxu0 0
        %2175 = vmatpush1.bf16.msra.mxu0 %v2172
        %2176 = vmatprep.subr.bf16.mxu0 0
        %2177 = vmatpush1.bf16.msra.mxu0 0
        %2178 = vmatprep.subr.bf16.mxu0 0
        %2179 = vmatpush1.bf16.msra.mxu0 0
        %2180 = vmatprep.subr.bf16.mxu0 0
        %2181 = vmatpush1.bf16.msra.mxu0 0
        %2182 = vmatprep.subr.bf16.mxu0 0
        %2183 = vmatpush1.bf16.msra.mxu0 0
        %2184 = vmatprep.subr.bf16.mxu0 0
        %2185 = vmatpush1.bf16.msra.mxu0 0
        %2186 = vmatprep.subr.bf16.mxu0 0
        %2187 = vmatpush1.bf16.msra.mxu0 0
        %2188 = vmatprep.subr.bf16.mxu0 0
        %2189 = vmatpush1.bf16.msra.mxu0 0
        %2190 = vmatprep.subr.bf16.mxu0 0
        %2191 = vmatpush1.bf16.msra.mxu0 0
        %2192 = vmatprep.subr.bf16.mxu0 0
        %2193 = vmatpush1.bf16.msra.mxu0 0
        %2194 = vmatprep.subr.bf16.mxu0 0
        %2195 = vmatpush1.bf16.msra.mxu0 0
        %2196 = vmatprep.subr.bf16.mxu0 0
        %2197 = vmatpush1.bf16.msra.mxu0 0
        %2198 = vmatprep.subr.bf16.mxu0 0
        %2199 = vmatpush1.bf16.msra.mxu0 0
        %2200 = vmatprep.subr.bf16.mxu0 0
        %2201 = vmatpush1.bf16.msra.mxu0 0
        %2202 = vmatprep.subr.bf16.mxu0 0
        %2203 = vmatpush1.bf16.msra.mxu0 0
        %2204 = vmatprep.subr.bf16.mxu0 0
        %2205 = vmatpush1.bf16.msra.mxu0 0
        %2206 = vmatprep.mubr.bf16.mxu0 0
        %2207 = vmatmul.mubr.bf16.gmra.mrb[0].mxu0 %v2169
        %v2208 = vpop.f32.mrb[0].mxu0
        %v2209 = vadd.f32 0.0, %v2208
        %v2210 = vpop.f32.mrb[0].mxu0
        %v2211 = vpop.f32.mrb[0].mxu0
        %v2212 = vpop.f32.mrb[0].mxu0
        %2213 = vdwg.mxu0
        %2214 = vrot.lane.b32.xlu0 %v533, 80
        %v2215 = vpop.permute.xlu0 %2214
        %v2217 = vsel %vm736, %v2116, 0
        %v2220 = vsel %vm788, %v2215, 0
        %2222 = vmatprep.subr.bf16.mxu0 0
        %2223 = vmatpush1.bf16.msra.mxu0 %v2220
        %2224 = vmatprep.subr.bf16.mxu0 0
        %2225 = vmatpush1.bf16.msra.mxu0 0
        %2226 = vmatprep.subr.bf16.mxu0 0
        %2227 = vmatpush1.bf16.msra.mxu0 0
        %2228 = vmatprep.subr.bf16.mxu0 0
        %2229 = vmatpush1.bf16.msra.mxu0 0
        %2230 = vmatprep.subr.bf16.mxu0 0
        %2231 = vmatpush1.bf16.msra.mxu0 0
        %2232 = vmatprep.subr.bf16.mxu0 0
        %2233 = vmatpush1.bf16.msra.mxu0 0
        %2234 = vmatprep.subr.bf16.mxu0 0
        %2235 = vmatpush1.bf16.msra.mxu0 0
        %2236 = vmatprep.subr.bf16.mxu0 0
        %2237 = vmatpush1.bf16.msra.mxu0 0
        %2238 = vmatprep.subr.bf16.mxu0 0
        %2239 = vmatpush1.bf16.msra.mxu0 0
        %2240 = vmatprep.subr.bf16.mxu0 0
        %2241 = vmatpush1.bf16.msra.mxu0 0
        %2242 = vmatprep.subr.bf16.mxu0 0
        %2243 = vmatpush1.bf16.msra.mxu0 0
        %2244 = vmatprep.subr.bf16.mxu0 0
        %2245 = vmatpush1.bf16.msra.mxu0 0
        %2246 = vmatprep.subr.bf16.mxu0 0
        %2247 = vmatpush1.bf16.msra.mxu0 0
        %2248 = vmatprep.subr.bf16.mxu0 0
        %2249 = vmatpush1.bf16.msra.mxu0 0
        %2250 = vmatprep.subr.bf16.mxu0 0
        %2251 = vmatpush1.bf16.msra.mxu0 0
        %2252 = vmatprep.subr.bf16.mxu0 0
        %2253 = vmatpush1.bf16.msra.mxu0 0
        %2254 = vmatprep.mubr.bf16.mxu0 0
        %2255 = vmatmul.mubr.bf16.gmra.mrb[0].mxu0 %v2217
        %v2256 = vpop.f32.mrb[0].mxu0
        %v2257 = vadd.f32 0.0, %v2256
        %v2258 = vpop.f32.mrb[0].mxu0
        %v2259 = vpop.f32.mrb[0].mxu0
        %v2260 = vpop.f32.mrb[0].mxu0
        %2261 = vdwg.mxu0
        %2262 = vrot.lane.b32.xlu0 %v534, 80
        %v2263 = vpop.permute.xlu0 %2262
        %v2265 = vsel %vm736, %v2117, 0
        %v2268 = vsel %vm788, %v2263, 0
        %2270 = vmatprep.subr.bf16.mxu0 0
        %2271 = vmatpush1.bf16.msra.mxu0 %v2268
        %2272 = vmatprep.subr.bf16.mxu0 0
        %2273 = vmatpush1.bf16.msra.mxu0 0
        %2274 = vmatprep.subr.bf16.mxu0 0
        %2275 = vmatpush1.bf16.msra.mxu0 0
        %2276 = vmatprep.subr.bf16.mxu0 0
        %2277 = vmatpush1.bf16.msra.mxu0 0
        %2278 = vmatprep.subr.bf16.mxu0 0
        %2279 = vmatpush1.bf16.msra.mxu0 0
        %2280 = vmatprep.subr.bf16.mxu0 0
        %2281 = vmatpush1.bf16.msra.mxu0 0
        %2282 = vmatprep.subr.bf16.mxu0 0
        %2283 = vmatpush1.bf16.msra.mxu0 0
        %2284 = vmatprep.subr.bf16.mxu0 0
        %2285 = vmatpush1.bf16.msra.mxu0 0
        %2286 = vmatprep.subr.bf16.mxu0 0
        %2287 = vmatpush1.bf16.msra.mxu0 0
        %2288 = vmatprep.subr.bf16.mxu0 0
        %2289 = vmatpush1.bf16.msra.mxu0 0
        %2290 = vmatprep.subr.bf16.mxu0 0
        %2291 = vmatpush1.bf16.msra.mxu0 0
        %2292 = vmatprep.subr.bf16.mxu0 0
        %2293 = vmatpush1.bf16.msra.mxu0 0
        %2294 = vmatprep.subr.bf16.mxu0 0
        %2295 = vmatpush1.bf16.msra.mxu0 0
        %2296 = vmatprep.subr.bf16.mxu0 0
        %2297 = vmatpush1.bf16.msra.mxu0 0
        %2298 = vmatprep.subr.bf16.mxu0 0
        %2299 = vmatpush1.bf16.msra.mxu0 0
        %2300 = vmatprep.subr.bf16.mxu0 0
        %2301 = vmatpush1.bf16.msra.mxu0 0
        %2302 = vmatprep.mubr.bf16.mxu0 0
        %2303 = vmatmul.mubr.bf16.gmra.mrb[0].mxu0 %v2265
        %v2304 = vpop.f32.mrb[0].mxu0
        %v2305 = vadd.f32 0.0, %v2304
        %v2306 = vpop.f32.mrb[0].mxu0
        %v2307 = vpop.f32.mrb[0].mxu0
        %v2308 = vpop.f32.mrb[0].mxu0
        %2309 = vdwg.mxu0
        %2314 = vrot.lane.b32.xlu0 %v1270, 16
        %v2315 = vpop.permute.xlu0 %2314
        %2316 = vrot.lane.b32.xlu0 %v1319, 16
        %v2317 = vpop.permute.xlu0 %2316
        %2318 = vrot.lane.b32.xlu0 %v1368, 16
        %v2319 = vpop.permute.xlu0 %2318
        %2320 = vrot.lane.b32.xlu0 %v1417, 16
        %v2321 = vpop.permute.xlu0 %2320
        %2330 = vrot.lane.b32.xlu0 %v1717, 32
        %v2331 = vpop.permute.xlu0 %2330
        %2332 = vrot.lane.b32.xlu0 %v1765, 32
        %v2333 = vpop.permute.xlu0 %2332
        %2334 = vrot.lane.b32.xlu0 %v1813, 32
        %v2335 = vpop.permute.xlu0 %2334
        %2336 = vrot.lane.b32.xlu0 %v1861, 32
        %v2337 = vpop.permute.xlu0 %2336
        %2346 = vrot.lane.b32.xlu0 %v2161, 48
        %v2347 = vpop.permute.xlu0 %2346
        %2348 = vrot.lane.b32.xlu0 %v2209, 48
        %v2349 = vpop.permute.xlu0 %2348
        %2350 = vrot.lane.b32.xlu0 %v2257, 48
        %v2351 = vpop.permute.xlu0 %2350
        %2352 = vrot.lane.b32.xlu0 %v2305, 48
        %v2353 = vpop.permute.xlu0 %2352
        %v2358 = vsel %vm538, %v827, %v2315
        %v2359 = vsel %vm538, %v873, %v2317
        %v2360 = vsel %vm538, %v919, %v2319
        %v2361 = vsel %vm538, %v965, %v2321
        %v2362 = vsel %vm323, %v2358, %v2331
        %v2363 = vsel %vm323, %v2359, %v2333
        %v2364 = vsel %vm323, %v2360, %v2335
        %v2365 = vsel %vm323, %v2361, %v2337
        %vm2366 = vcmask 392192
        %v2367 = vsel %vm2366, %v2362, %v2347
        %v2368 = vsel %vm2366, %v2363, %v2349
        %v2369 = vsel %vm2366, %v2364, %v2351
        %v2370 = vsel %vm2366, %v2365, %v2353
        %v2371 = vpack.c.bf16 %v2368, %v2367
        %v2372 = vpack.c.bf16 %v2370, %v2369
        %v2373 = vld [vmem:[%s5] sm:$0xf]
        %v2374 = vld [vmem:[%s5 + $0x4] sm:$0xf]
        %v2375 = vld [vmem:[%s5 + $0x8] sm:$0xf]
        %v2376 = vld [vmem:[%s5 + $0xc] sm:$0xf]
        %v2377 = vld [vmem:[%s5 + $0x10] sm:$0xf]
        %v2378 = vld [vmem:[%s5 + $0x14] sm:$0xf]
        %v2379 = vld [vmem:[%s5 + $0x18] sm:$0xf]
        %v2380 = vld [vmem:[%s5 + $0x1c] sm:$0xf]
        %v2381 = vld [vmem:[%s6] sm:$0x1]
        %v2383 = vlaneseq
        %v2384 = vshrl.u32 %v2383, 7
        %v2385 = vsub.s32 0, %v2384
        %v2386 = vrot.slane %v2381, %v2385
        %v2396 = vunpack.c.l.b16 %v2373
        %v2397 = vunpack.c.l.b16 %v2374
        %v2398 = vunpack.c.l.b16 %v2375
        %v2399 = vunpack.c.l.b16 %v2376
        %v2400 = vunpack.c.l.b16 %v2377
        %v2401 = vunpack.c.l.b16 %v2378
        %v2402 = vunpack.c.l.b16 %v2379
        %v2403 = vunpack.c.l.b16 %v2380
        %v2404 = vpack.c.b16 %v2397, %v2396
        %v2405 = vpack.c.b16 %v2399, %v2398
        %v2406 = vpack.c.b16 %v2401, %v2400
        %v2407 = vpack.c.b16 %v2403, %v2402
        %vm2412 = vcmask 523264
        %v2414 = vsel %vm2412, %v2371, 0
        %v2417 = vsel %vm2412, %v2372, 0
        %2419 = vmatprep.subr.bf16.mxu0 0
        %2420 = vmatpush1.bf16.msra.mxu0 %v2404
        %2421 = vmatprep.subr.bf16.mxu0 0
        %2422 = vmatpush1.bf16.msra.mxu0 %v2405
        %2423 = vmatprep.subr.bf16.mxu0 0
        %2424 = vmatpush1.bf16.msra.mxu0 %v2406
        %2425 = vmatprep.subr.bf16.mxu0 0
        %2426 = vmatpush1.bf16.msra.mxu0 %v2407
        %2427 = vmatprep.subr.bf16.mxu0 0
        %2428 = vmatpush1.bf16.msra.mxu0 0
        %2429 = vmatprep.subr.bf16.mxu0 0
        %2430 = vmatpush1.bf16.msra.mxu0 0
        %2431 = vmatprep.subr.bf16.mxu0 0
        %2432 = vmatpush1.bf16.msra.mxu0 0
        %2433 = vmatprep.subr.bf16.mxu0 0
        %2434 = vmatpush1.bf16.msra.mxu0 0
        %2435 = vmatprep.subr.bf16.mxu0 0
        %2436 = vmatpush1.bf16.msra.mxu0 0
        %2437 = vmatprep.subr.bf16.mxu0 0
        %2438 = vmatpush1.bf16.msra.mxu0 0
        %2439 = vmatprep.subr.bf16.mxu0 0
        %2440 = vmatpush1.bf16.msra.mxu0 0
        %2441 = vmatprep.subr.bf16.mxu0 0
        %2442 = vmatpush1.bf16.msra.mxu0 0
        %2443 = vmatprep.subr.bf16.mxu0 0
        %2444 = vmatpush1.bf16.msra.mxu0 0
        %2445 = vmatprep.subr.bf16.mxu0 0
        %2446 = vmatpush1.bf16.msra.mxu0 0
        %2447 = vmatprep.subr.bf16.mxu0 0
        %2448 = vmatpush1.bf16.msra.mxu0 0
        %2449 = vmatprep.subr.bf16.mxu0 0
        %2450 = vmatpush1.bf16.msra.mxu0 0
        %2451 = vmatprep.mubr.bf16.mxu0 0
        %2452 = vmatmul.mubr.bf16.gmra.mrb[0].mxu0 %v2414
        %v2453 = vpop.f32.mrb[0].mxu0
        %v2454 = vadd.f32 %v2386, %v2453
        %v2455 = vpop.f32.mrb[0].mxu0
        %v2456 = vpop.f32.mrb[0].mxu0
        %v2457 = vadd.f32 %v2386, %v2456
        %v2458 = vpop.f32.mrb[0].mxu0
        %2459 = vmatprep.mubr.bf16.mxu0 0
        %2460 = vmatmul.mubr.bf16.gmra.mrb[0].mxu0 %v2417
        %v2461 = vpop.f32.mrb[0].mxu0
        %v2462 = vadd.f32 %v2386, %v2461
        %v2463 = vpop.f32.mrb[0].mxu0
        %v2464 = vpop.f32.mrb[0].mxu0
        %v2465 = vadd.f32 %v2386, %v2464
        %v2466 = vpop.f32.mrb[0].mxu0
        %2467 = vdwg.mxu0
        %2468 = vst.msk [vmem:[%s310] sm:$0xff] %vm323, %v2454
        %2469 = vst.msk [vmem:[%s310 + $0x8] sm:$0xff] %vm323, %v2457
        %2470 = vst.msk [vmem:[%s310 + $0x10] sm:$0xff] %vm323, %v2462
        %2471 = vst.msk [vmem:[%s310 + $0x18] sm:$0xff] %vm323, %v2465
        %s2472 = sand.u32 %s189, 1
        %s2473 = scalar_lea.sflag [#allocation4], %s2472
        %s2474 = sand.u32 %s189, 1
        %s2475 = smul.addr %s2474, 32
        %s2476 = scalar_lea.vmem [#allocation5], %s2475
        // Predicated region
        $region53: #{tpu_custom_call.1} parent=47 // pred_check
          %p2477 = pneg %p199
        $region54: #{tpu_custom_call.1} parent=47 // pred_check_branch
          %2479 = sbr.rel (%p2477) target = $region56
        $region55: #{tpu_custom_call.1} parent=47 // pred_region
          %s2480 = smul.u32 4, %s24
          %s2482 = ssub.s32 512, 512
          %2483 = vsyncadd %s2473, %s2482
          %s2484 = smul.addr %s2480, 128
          %s2485 = scalar_lea.hbm %s7, %s2484
          %s2486 = sshll.u32 %s2476, 4
          %s2487 = int_to_ptr.vmem [resolvable:$true] %s2486
          %2492 = dma.vmem_to_hbm [thread:$0]  %s2487, 512, %s2485, %s2473, 128, 128, 8
        $region56: #{tpu_custom_call.1} parent=47 // pred_fallthru
          _
      $region48: #{tpu_custom_call.1} parent=5 // pred_fallthru
        _
      %p2493 = scmp.le.s32.totalorder 2, %s19
      // Predicated region
      $region57: #{tpu_custom_call.1} parent=5 // pred_check
        %p2494 = pneg %p2493
      $region58: #{tpu_custom_call.1} parent=5 // pred_check_branch
        %2496 = sbr.rel (%p2494) target = $region60
      $region59: #{tpu_custom_call.1} parent=5 // pred_region
        %s2497 = ssub.s32 %s19, 2
        // Predicated region
        $region61: #{tpu_custom_call.1} parent=59 // pred_check
          %p2498 = pneg %p205
        $region62: #{tpu_custom_call.1} parent=59 // pred_check_branch
          %2500 = sbr.rel (%p2498) target = $region64
        $region63: #{tpu_custom_call.1} parent=59 // pred_region
          %s2501 = sand.u32 %s190, 1
          %s2502 = scalar_lea.sflag [#allocation4], %s2501
          %s2503 = sand.u32 %s190, 1
          %s2504 = smul.addr %s2503, 32
          %s2505 = scalar_lea.vmem [#allocation5], %s2504
          %2506 = dma.done %s2502, 512
        $region64: #{tpu_custom_call.1} parent=59 // pred_fallthru
          _
      $region60: #{tpu_custom_call.1} parent=5 // pred_fallthru
        _
    $region6: #{tpu_custom_call.1} parent=1 // loop_footer
      %s23 = sadd.s32 1, %s19
    $region7: #{tpu_custom_call.1} parent=1 // loop_footer_branch
      %18 = sbr.rel target = $region3
    $region8: #{tpu_custom_call.1} parent=1 // loop_exit
      _
    %2507 = vsyncpa [#allocation3], 1
    %s2508 = scalar_lea.sflag [#allocation3], 1
    %2509 = vsyncpa %s2508, 1
    %2510 = vsyncpa [#allocation4], 1
    %s2511 = scalar_lea.sflag [#allocation4], 1
    %2512 = vsyncpa %s2511, 1

</llo_original>
